<compile_context>
chip_gen: v7x
topology: tpu7x:2x2x1
jax: 0.10.0
libtpu: 0.0.40
codegen_flags: <defaults>
</compile_context>

<pallas_src>
import jax
import jax.numpy as jnp
from jax import lax
from jax.experimental import pallas as pl
from jax.experimental.pallas import tpu as pltpu


def _upsample_matrix(in_size, scale=2):
    """(scale*in_size, in_size) bilinear interpolation matrix (align_corners=False)."""
    out_size = scale * in_size
    d = jnp.arange(out_size, dtype=jnp.float32)
    src = jnp.maximum((d + 0.5) / scale - 0.5, 0.0)
    i0 = jnp.floor(src).astype(jnp.int32)
    i1 = jnp.minimum(i0 + 1, in_size - 1)
    lam = src - i0.astype(jnp.float32)
    rows = jnp.arange(out_size)
    m = jnp.zeros((out_size, in_size), jnp.float32)
    m = m.at[rows, i0].add(1.0 - lam)
    m = m.at[rows, i1].add(lam)
    return m


def _make_kernel(eps, inv_hw, upsample):
    def kernel(x_ref, w_ref, b_ref, g_ref, beta_ref, A_ref, *rest):
        if upsample:
            P_ref, o_ref = rest
        else:
            (o_ref,) = rest

        patches = x_ref[0]                                  # (9*Cin, HW) bf16, lane-dense

        # ---- 3x3 conv as ONE im2col MXU matmul, f32 accumulation ----
        # y[co, hw] = sum_k w2[co, k] * patches[k, hw],  k = (dy*3+dx)*Cin + ci
        y = jnp.dot(w_ref[...], patches, preferred_element_type=jnp.float32)  # (Cout, HW)
        y = y + b_ref[...]                                  # conv bias (Cout,1) broadcast

        # ---- GroupNorm(16): spatial sums first, then tiny group-mix matmul ----
        # A is the (Cout, Cout) group-averaging matrix (includes 1/channels_per_group);
        # it commutes with the spatial sum, so the big A@y matmuls are gone.
        s = jnp.sum(y, axis=1, keepdims=True)                               # (Cout, 1)
        mu = jnp.dot(A_ref[...], s, preferred_element_type=jnp.float32) * inv_hw
        yc = y - mu
        ss = jnp.sum(yc * yc, axis=1, keepdims=True)                        # centered var
        var = jnp.dot(A_ref[...], ss, preferred_element_type=jnp.float32) * inv_hw
        rstd = lax.rsqrt(var + eps)
        f = jnp.maximum(yc * (rstd * g_ref[...]) + beta_ref[...], 0.0)      # (Cout, HW) ReLU

        if upsample:
            # ---- bilinear x2 (align_corners=False) + interleave: one bf16 MXU matmul ----
            # o[c, r*2W+q] = sum_{hw} f[c, hw] * P[hw, r*2W+q]
            o_ref[0] = jnp.dot(f.astype(jnp.bfloat16), P_ref[...],
                               preferred_element_type=jnp.float32)          # (Cout, 4HW)
        else:
            o_ref[0] = f

    return kernel


def upsample_block_forward(x_nchw, w_oihw, bias, gamma, beta, *,
                           upsample=True, num_groups=16, eps=1e-5):
    N, Cin, H, W = x_nchw.shape
    Cout = w_oihw.shape[0]
    assert Cout % num_groups == 0
    cpg = Cout // num_groups
    HW = H * W

    # ---- host-side glue on the (small) input side only ----
    # im2col, channel-major (9*Cin, HW): lane dim = HW (dense), bf16 halves the DMA
    # and removes every in-kernel tap slice / reshape / cast.
    xpad = jnp.pad(x_nchw, ((0, 0), (0, 0), (1, 1), (1, 1)))
    taps = [xpad[:, :, dy:dy + H, dx:dx + W].reshape(N, Cin, HW)
            for dy in range(3) for dx in range(3)]
    patches = jnp.concatenate(taps, axis=1).astype(jnp.bfloat16)     # (N, 9*Cin, HW)

    # Weights packed to match: w2[co, (dy*3+dx)*Cin + ci] = w[co, ci, dy, dx]
    w2 = jnp.transpose(w_oihw, (0, 2, 3, 1)).reshape(Cout, 9 * Cin).astype(jnp.bfloat16)
    b_col = bias.reshape(Cout, 1).astype(jnp.float32)
    g_col = gamma.reshape(Cout, 1).astype(jnp.float32)
    beta_col = beta.reshape(Cout, 1).astype(jnp.float32)
    groups = jnp.arange(Cout) // cpg
    A = (groups[:, None] == groups[None, :]).astype(jnp.float32) / cpg   # group-avg matrix

    ins = [patches, w2, b_col, g_col, beta_col, A]
    in_specs = [
        pl.BlockSpec((1, 9 * Cin, HW), lambda n: (n, 0, 0)),
        pl.BlockSpec((Cout, 9 * Cin), lambda n: (0, 0)),
        pl.BlockSpec((Cout, 1), lambda n: (0, 0)),
        pl.BlockSpec((Cout, 1), lambda n: (0, 0)),
        pl.BlockSpec((Cout, 1), lambda n: (0, 0)),
        pl.BlockSpec((Cout, Cout), lambda n: (0, 0)),
    ]
    if upsample:
        RU = _upsample_matrix(H)                       # (2H, H)
        CW = _upsample_matrix(W)                       # (2W, W)
        # P[h*W+w, r*2W+q] = RU[r,h] * CW[q,w]; these lerp weights are exact in bf16.
        P = jnp.einsum('rh,qw->hwrq', RU, CW).reshape(HW, 4 * HW).astype(jnp.bfloat16)
        ins.append(P)
        in_specs.append(pl.BlockSpec((HW, 4 * HW), lambda n: (0, 0)))
        out_len = 4 * HW
    else:
        out_len = HW

    out = pl.pallas_call(
        _make_kernel(eps, 1.0 / HW, upsample),
        out_shape=jax.ShapeDtypeStruct((N, Cout, out_len), jnp.float32),
        grid=(N,),
        in_specs=in_specs,
        # Lane-dense output block (last dim multiple of 128 for H=W=16): unmasked
        # stores, and the HBM layout is already channel-major NCHW after a free reshape.
        out_specs=pl.BlockSpec((1, Cout, out_len), lambda n: (n, 0, 0)),
        compiler_params=pltpu.CompilerParams(
            dimension_semantics=("parallel",),
            vmem_limit_bytes=32 * 1024 * 1024),
    )(*ins)

    Ho, Wo = (2 * H, 2 * W) if upsample else (H, W)
    return out.reshape(N, Cout, Ho, Wo)                # free row-major reshape, NCHW


def reference_forward(x, w, bias, gamma, beta, *, upsample=True):
    """Pure-JAX reference mirroring the PyTorch module semantics (f32)."""
    y = lax.conv_general_dilated(
        x, w, window_strides=(1, 1), padding="SAME",
        dimension_numbers=("NCHW", "OIHW", "NCHW"))
    y = y + bias[None, :, None, None]
    N, C, H, W = y.shape
    G = 16
    yg = y.reshape(N, G, -1)
    mu = yg.mean(-1, keepdims=True)
    var = ((yg - mu) ** 2).mean(-1, keepdims=True)
    yn = ((yg - mu) * lax.rsqrt(var + 1e-5)).reshape(N, C, H, W)
    f = jnp.maximum(yn * gamma[None, :, None, None] + beta[None, :, None, None], 0.0)
    if not upsample:
        return f

    def coords(out_size, in_size):
        d = jnp.arange(out_size, dtype=jnp.float32)
        src = jnp.maximum((d + 0.5) * (in_size / out_size) - 0.5, 0.0)
        i0 = jnp.floor(src).astype(jnp.int32)
        i1 = jnp.minimum(i0 + 1, in_size - 1)
        lam = src - i0.astype(jnp.float32)
        return i0, i1, lam

    h0, h1, lh = coords(2 * H, H)
    w0, w1, lw = coords(2 * W, W)
    rows = (f[:, :, h0, :] * (1 - lh)[None, None, :, None]
            + f[:, :, h1, :] * lh[None, None, :, None])
    out = (rows[:, :, :, w0] * (1 - lw)[None, None, None, :]
           + rows[:, :, :, w1] * lw[None, None, None, :])
    return out


if __name__ == "__main__":
    N, Cin, H, W = 2, 4, 16, 16
    Cout = 32  # multiple of num_groups=16; 32 exercises real group averaging

    key = jax.random.PRNGKey(0)
    k1, k2, k3, k4, k5 = jax.random.split(key, 5)
    x = jax.random.normal(k1, (N, Cin, H, W), jnp.float32)
    w = 0.2 * jax.random.normal(k2, (Cout, Cin, 3, 3), jnp.float32)
    bias = 0.1 * jax.random.normal(k3, (Cout,), jnp.float32)
    gamma = 1.0 + 0.1 * jax.random.normal(k4, (Cout,), jnp.float32)
    beta = 0.1 * jax.random.normal(k5, (Cout,), jnp.float32)

    # upsample=True (module default)
    out = upsample_block_forward(x, w, bias, gamma, beta, upsample=True)
    out = jax.block_until_ready(out)
    assert out.shape == (N, Cout, 2 * H, 2 * W), out.shape
    ref = reference_forward(x, w, bias, gamma, beta, upsample=True)
    err = float(jnp.max(jnp.abs(out - ref)))
    # Conv + upsample matmul operands are bf16 (f32 accumulation, f32 GroupNorm stats),
    # so compare against the f32 reference with a bf16-appropriate tolerance.
    assert err < 5e-2, f"upsample=True max abs error vs reference: {err}"

    # upsample=False path
    out2 = upsample_block_forward(x, w, bias, gamma, beta, upsample=False)
    out2 = jax.block_until_ready(out2)
    assert out2.shape == (N, Cout, H, W), out2.shape
    ref2 = reference_forward(x, w, bias, gamma, beta, upsample=False)
    err2 = float(jnp.max(jnp.abs(out2 - ref2)))
    assert err2 < 5e-2, f"upsample=False max abs error vs reference: {err2}"

    print("KERNEL_OK")
</pallas_src>

<mosaic_0001>
module attributes {stable_mosaic.version = 11 : i64} {
  func.func @kernel(%arg0: i32, %arg1: memref<1x36x256xbf16, #tpu.memory_space<vmem>>, %arg2: memref<32x36xbf16, #tpu.memory_space<vmem>>, %arg3: memref<32x1xf32, #tpu.memory_space<vmem>>, %arg4: memref<32x1xf32, #tpu.memory_space<vmem>>, %arg5: memref<32x1xf32, #tpu.memory_space<vmem>>, %arg6: memref<32x32xf32, #tpu.memory_space<vmem>>, %arg7: memref<256x1024xbf16, #tpu.memory_space<vmem>>, %arg8: memref<1x32x1024xf32, #tpu.memory_space<vmem>>) attributes {dimension_semantics = [#tpu.dimension_semantics<parallel>], iteration_bounds = array<i64: 2>, scalar_prefetch = 0 : i64, scratch_operands = 0 : i64, tpu.core_type = #tpu.core_type<tc>, window_params = [{transform_indices = @transform_0, window_bounds = array<i64: 1, 36, 256>}, {pipeline_mode = #tpu.pipeline_mode<synchronous>, transform_indices = @transform_1, window_bounds = array<i64: 32, 36>}, {pipeline_mode = #tpu.pipeline_mode<synchronous>, transform_indices = @transform_2, window_bounds = array<i64: 32, 1>}, {pipeline_mode = #tpu.pipeline_mode<synchronous>, transform_indices = @transform_3, window_bounds = array<i64: 32, 1>}, {pipeline_mode = #tpu.pipeline_mode<synchronous>, transform_indices = @transform_4, window_bounds = array<i64: 32, 1>}, {pipeline_mode = #tpu.pipeline_mode<synchronous>, transform_indices = @transform_5, window_bounds = array<i64: 32, 32>}, {pipeline_mode = #tpu.pipeline_mode<synchronous>, transform_indices = @transform_6, window_bounds = array<i64: 256, 1024>}, {transform_indices = @transform_7, window_bounds = array<i64: 1, 32, 1024>}]} {
    %c0 = arith.constant 0 : index
    %c0_0 = arith.constant 0 : index
    %c0_1 = arith.constant 0 : index
    %0 = vector.load %arg1[%c0, %c0_0, %c0_1] : memref<1x36x256xbf16, #tpu.memory_space<vmem>>, vector<1x36x256xbf16>
    %1 = vector.shape_cast %0 : vector<1x36x256xbf16> to vector<36x256xbf16>
    %c0_2 = arith.constant 0 : index
    %c0_3 = arith.constant 0 : index
    %2 = vector.load %arg2[%c0_2, %c0_3] : memref<32x36xbf16, #tpu.memory_space<vmem>>, vector<32x36xbf16>
    %cst = arith.constant dense<0.000000e+00> : vector<32x256xf32>
    %3 = tpu.matmul %2, %1, %cst {dimension_numbers = #tpu.dot_dimension_numbers<[1], [0], [0], [1], [0, 0, 1, 1], [], []>} : vector<32x36xbf16>, vector<36x256xbf16>, vector<32x256xf32> -> vector<32x256xf32>
    %c0_4 = arith.constant 0 : index
    %c0_5 = arith.constant 0 : index
    %4 = vector.load %arg3[%c0_4, %c0_5] : memref<32x1xf32, #tpu.memory_space<vmem>>, vector<32x1xf32>
    %5 = vector.broadcast %4 : vector<32x1xf32> to vector<32x256xf32>
    %6 = arith.addf %3, %5 : vector<32x256xf32>
    %cst_6 = arith.constant dense<0.000000e+00> : vector<32xf32>
    %7 = vector.multi_reduction <add>, %6, %cst_6 [1] : vector<32x256xf32> to vector<32xf32>
    %8 = vector.shape_cast %7 : vector<32xf32> to vector<32x1xf32>
    %c0_7 = arith.constant 0 : index
    %c0_8 = arith.constant 0 : index
    %9 = vector.load %arg6[%c0_7, %c0_8] : memref<32x32xf32, #tpu.memory_space<vmem>>, vector<32x32xf32>
    %cst_9 = arith.constant dense<0.000000e+00> : vector<32x1xf32>
    %10 = tpu.matmul %9, %8, %cst_9 {dimension_numbers = #tpu.dot_dimension_numbers<[1], [0], [0], [1], [0, 0, 1, 1], [], []>} : vector<32x32xf32>, vector<32x1xf32>, vector<32x1xf32> -> vector<32x1xf32>
    %cst_10 = arith.constant 3.906250e-03 : f32
    %11 = vector.broadcast %cst_10 : f32 to vector<32x1xf32>
    %12 = arith.mulf %10, %11 : vector<32x1xf32>
    %13 = vector.broadcast %12 : vector<32x1xf32> to vector<32x256xf32>
    %14 = arith.subf %6, %13 : vector<32x256xf32>
    %15 = arith.mulf %14, %14 : vector<32x256xf32>
    %cst_11 = arith.constant dense<0.000000e+00> : vector<32xf32>
    %16 = vector.multi_reduction <add>, %15, %cst_11 [1] : vector<32x256xf32> to vector<32xf32>
    %17 = vector.shape_cast %16 : vector<32xf32> to vector<32x1xf32>
    %c0_12 = arith.constant 0 : index
    %c0_13 = arith.constant 0 : index
    %18 = vector.load %arg6[%c0_12, %c0_13] : memref<32x32xf32, #tpu.memory_space<vmem>>, vector<32x32xf32>
    %cst_14 = arith.constant dense<0.000000e+00> : vector<32x1xf32>
    %19 = tpu.matmul %18, %17, %cst_14 {dimension_numbers = #tpu.dot_dimension_numbers<[1], [0], [0], [1], [0, 0, 1, 1], [], []>} : vector<32x32xf32>, vector<32x1xf32>, vector<32x1xf32> -> vector<32x1xf32>
    %cst_15 = arith.constant 3.906250e-03 : f32
    %20 = vector.broadcast %cst_15 : f32 to vector<32x1xf32>
    %21 = arith.mulf %19, %20 : vector<32x1xf32>
    %cst_16 = arith.constant 9.99999974E-6 : f32
    %22 = vector.broadcast %cst_16 : f32 to vector<32x1xf32>
    %23 = arith.addf %21, %22 : vector<32x1xf32>
    %24 = math.rsqrt %23 : vector<32x1xf32>
    %c0_17 = arith.constant 0 : index
    %c0_18 = arith.constant 0 : index
    %25 = vector.load %arg4[%c0_17, %c0_18] : memref<32x1xf32, #tpu.memory_space<vmem>>, vector<32x1xf32>
    %26 = arith.mulf %24, %25 : vector<32x1xf32>
    %27 = vector.broadcast %26 : vector<32x1xf32> to vector<32x256xf32>
    %28 = arith.mulf %14, %27 : vector<32x256xf32>
    %c0_19 = arith.constant 0 : index
    %c0_20 = arith.constant 0 : index
    %29 = vector.load %arg5[%c0_19, %c0_20] : memref<32x1xf32, #tpu.memory_space<vmem>>, vector<32x1xf32>
    %30 = vector.broadcast %29 : vector<32x1xf32> to vector<32x256xf32>
    %31 = arith.addf %28, %30 : vector<32x256xf32>
    %cst_21 = arith.constant 0.000000e+00 : f32
    %32 = vector.broadcast %cst_21 : f32 to vector<32x256xf32>
    %33 = arith.maximumf %31, %32 : vector<32x256xf32>
    %34 = arith.truncf %33 : vector<32x256xf32> to vector<32x256xbf16>
    %c0_22 = arith.constant 0 : index
    %c0_23 = arith.constant 0 : index
    %35 = vector.load %arg7[%c0_22, %c0_23] : memref<256x1024xbf16, #tpu.memory_space<vmem>>, vector<256x1024xbf16>
    %cst_24 = arith.constant dense<0.000000e+00> : vector<32x1024xf32>
    %36 = tpu.matmul %34, %35, %cst_24 {dimension_numbers = #tpu.dot_dimension_numbers<[1], [0], [0], [1], [0, 0, 1, 1], [], []>} : vector<32x256xbf16>, vector<256x1024xbf16>, vector<32x1024xf32> -> vector<32x1024xf32>
    %c0_25 = arith.constant 0 : index
    %c0_26 = arith.constant 0 : index
    %c0_27 = arith.constant 0 : index
    %37 = vector.load %arg8[%c0_25, %c0_26, %c0_27] : memref<1x32x1024xf32, #tpu.memory_space<vmem>>, vector<1x32x1024xf32>
    %38 = vector.shape_cast %37 : vector<1x32x1024xf32> to vector<32x1024xf32>
    %39 = vector.shape_cast %36 : vector<32x1024xf32> to vector<1x32x1024xf32>
    tpu.vector_store %arg8[%c0_25, %c0_26, %c0_27], %39 {strides = array<i32>} : memref<1x32x1024xf32, #tpu.memory_space<vmem>>, vector<1x32x1024xf32>,
    return
  }
  func.func @transform_0(%arg0: i32) -> (i32, i32, i32) {
    %c0_i32 = arith.constant 0 : i32
    %c0_i32_0 = arith.constant 0 : i32
    %c0_i32_1 = arith.constant 0 : i32
    return %arg0, %c0_i32, %c0_i32_0 : i32, i32, i32
  }
  func.func @transform_1(%arg0: i32) -> (i32, i32) {
    %c0_i32 = arith.constant 0 : i32
    %c0_i32_0 = arith.constant 0 : i32
    %c0_i32_1 = arith.constant 0 : i32
    return %c0_i32, %c0_i32_0 : i32, i32
  }
  func.func @transform_2(%arg0: i32) -> (i32, i32) {
    %c0_i32 = arith.constant 0 : i32
    %c0_i32_0 = arith.constant 0 : i32
    %c0_i32_1 = arith.constant 0 : i32
    return %c0_i32, %c0_i32_0 : i32, i32
  }
  func.func @transform_3(%arg0: i32) -> (i32, i32) {
    %c0_i32 = arith.constant 0 : i32
    %c0_i32_0 = arith.constant 0 : i32
    %c0_i32_1 = arith.constant 0 : i32
    return %c0_i32, %c0_i32_0 : i32, i32
  }
  func.func @transform_4(%arg0: i32) -> (i32, i32) {
    %c0_i32 = arith.constant 0 : i32
    %c0_i32_0 = arith.constant 0 : i32
    %c0_i32_1 = arith.constant 0 : i32
    return %c0_i32, %c0_i32_0 : i32, i32
  }
  func.func @transform_5(%arg0: i32) -> (i32, i32) {
    %c0_i32 = arith.constant 0 : i32
    %c0_i32_0 = arith.constant 0 : i32
    %c0_i32_1 = arith.constant 0 : i32
    return %c0_i32, %c0_i32_0 : i32, i32
  }
  func.func @transform_6(%arg0: i32) -> (i32, i32) {
    %c0_i32 = arith.constant 0 : i32
    %c0_i32_0 = arith.constant 0 : i32
    %c0_i32_1 = arith.constant 0 : i32
    return %c0_i32, %c0_i32_0 : i32, i32
  }
  func.func @transform_7(%arg0: i32) -> (i32, i32, i32) {
    %c0_i32 = arith.constant 0 : i32
    %c0_i32_0 = arith.constant 0 : i32
    %c0_i32_1 = arith.constant 0 : i32
    return %arg0, %c0_i32, %c0_i32_0 : i32, i32, i32
  }
}

</mosaic_0001>

<llo_original>
// kernel: tpu_custom_call.1
$region0: #{tpu_custom_call.1}
  #allocation0 [shape = 'u32[]', space=smem, size = 0x4, offset = 0x4, fixed_abs, tag = 'smem constant byte address 0x4 - core index']
  #allocation1 [shape = 'u32[144,128]{1,0:T(1,128)}', space=vmem, size = 0x12000, scoped, tag = 'internal scratch']
  %s0 = inlined_call_operand.vmem [shape: bf16[2,36,256], index: 0, kind: input, shape index: {}]
  %s1 = inlined_call_operand.vmem [shape: bf16[32,36], index: 1, kind: input, shape index: {}]
  %s2 = inlined_call_operand.vmem [shape: f32[32,1], index: 2, kind: input, shape index: {}]
  %s3 = inlined_call_operand.vmem [shape: f32[32,1], index: 3, kind: input, shape index: {}]
  %s4 = inlined_call_operand.vmem [shape: f32[32,1], index: 4, kind: input, shape index: {}]
  %s5 = inlined_call_operand.vmem [shape: f32[32,32], index: 5, kind: input, shape index: {}]
  %s6 = inlined_call_operand.hbm [shape: bf16[256,1024], index: 6, kind: input, shape index: {}]
  %s7 = inlined_call_operand.hbm [shape: f32[2,32,1024], index: 7, kind: output, shape index: {}]
  %s8 = sld [smem:[#allocation0]]
  $region65: #{tpu_custom_call.1} parent=0
    _
  %s10 = ssub.s32 1, %s8
  %s11 = scalar_select 0, %s10, %s8
  $region1: #{tpu_custom_call.1} parent=0
    #allocation2 [shape = 'u8[524288]{0}', space=vmem, size = 0x80000, scoped, tag = 'input window, operand 6, single buffered']
    #allocation3 [shape = 's32[2]{0}', space=sflag, size = 0x8, scoped, tag = 'scoped memory for tpu_custom_call.1']
    #allocation4 [shape = 's32[2]{0}', space=sflag, size = 0x8, scoped, tag = 'scoped memory for tpu_custom_call.1']
    #allocation5 [shape = 'u8[262144]{0}', space=vmem, size = 0x40000, scoped, tag = 'output window, operand 0']
    %12 = vsyncpa [#allocation3], 0
    %13 = vsyncpa [#allocation4], 0
    %s14 = scalar_lea.sflag [#allocation4], 1
    %15 = vsyncpa %s14, 0
    loop: start=0, step=1, limit=4
    $region2: #{tpu_custom_call.1} parent=1 // loop_pre_header
      _
    $region3: #{tpu_custom_call.1} parent=1 // loop_header
      %s17 = sphi 0, %s21
      %p18 = scmp.ge.s32.totalorder %s17, 4
      %s27 = sphi 0, %s29
      %s30 = sphi 0, %s27
      %s31 = sphi 0, %s30
      %s47 = sphi 0, %s31
      %s51 = sphi 0, %s51
      %s53 = sphi 0, %s51
      %s54 = sphi 0, %s53
      %s68 = sphi 0, %s54
      %s72 = sphi 0, %s72
      %s74 = sphi 0, %s72
      %s75 = sphi 0, %s74
      %s89 = sphi 0, %s75
      %s93 = sphi 0, %s93
      %s95 = sphi 0, %s93
      %s96 = sphi 0, %s95
      %s110 = sphi 0, %s96
      %s114 = sphi 0, %s114
      %s116 = sphi 0, %s114
      %s117 = sphi 0, %s116
      %s131 = sphi 0, %s117
      %s135 = sphi 0, %s135
      %s137 = sphi 0, %s135
      %s138 = sphi 0, %s137
      %s152 = sphi 0, %s138
      %s156 = sphi 0, %s156
      %s158 = sphi 0, %s156
      %s159 = sphi 0, %s158
      %s173 = sphi 0, %s159
      %s179 = sphi 0, %s181
      %s182 = sphi 0, %s179
      %s183 = sphi 0, %s182
      %s199 = sphi 0, %s183
    $region4: #{tpu_custom_call.1} parent=1 // loop_header_branch
      %20 = sbr.rel (%p18) target = $region8
    $region5: #{tpu_custom_call.1} parent=1 // loop_body
      %s22 = ssub.s32 %s17, 1
      %s23 = ssub.s32 %s17, 2
      %s24 = sadd.s32 %s17, 1
      %s25 = ssub.s32 %s17, %s24
      %p26 = scmp.eq.s32.totalorder %s25, 0
      %s28 = sadd.s32 %s27, 1
      %s29 = scalar_select %p26, %s27, %s28
      %p32 = pneg %p26
      %p33 = scmp.eq.s32.totalorder %s17, 1
      %p34 = por %p32, %p33
      %p35 = scmp.ne.s32.totalorder %s27, %s30
      %p36 = scmp.eq.s32.totalorder %s17, 0
      %p37 = por %p35, %p36
      %p38 = scmp.ne.s32.totalorder %s27, %s30
      %p39 = scmp.eq.s32.totalorder %s22, 1
      %p40 = por %p38, %p39
      %p41 = scmp.ne.s32.totalorder %s30, %s31
      %p42 = scmp.eq.s32.totalorder %s22, 0
      %p43 = por %p41, %p42
      %p44 = scmp.ne.s32.totalorder %s30, %s31
      %p45 = scmp.eq.s32.totalorder %s23, 1
      %p46 = por %p44, %p45
      %p48 = scmp.ne.s32.totalorder %s31, %s47
      %p49 = scmp.eq.s32.totalorder %s23, 0
      %p50 = por %p48, %p49
      %s52 = sadd.s32 %s51, 1
      %p55 = scmp.eq.s32.totalorder %s17, 1
      %p56 = scmp.ne.s32.totalorder %s51, %s53
      %p57 = scmp.eq.s32.totalorder %s17, 0
      %p58 = por %p56, %p57
      %p59 = scmp.ne.s32.totalorder %s51, %s53
      %p60 = scmp.eq.s32.totalorder %s22, 1
      %p61 = por %p59, %p60
      %p62 = scmp.ne.s32.totalorder %s53, %s54
      %p63 = scmp.eq.s32.totalorder %s22, 0
      %p64 = por %p62, %p63
      %p65 = scmp.ne.s32.totalorder %s53, %s54
      %p66 = scmp.eq.s32.totalorder %s23, 1
      %p67 = por %p65, %p66
      %p69 = scmp.ne.s32.totalorder %s54, %s68
      %p70 = scmp.eq.s32.totalorder %s23, 0
      %p71 = por %p69, %p70
      %s73 = sadd.s32 %s72, 1
      %p76 = scmp.eq.s32.totalorder %s17, 1
      %p77 = scmp.ne.s32.totalorder %s72, %s74
      %p78 = scmp.eq.s32.totalorder %s17, 0
      %p79 = por %p77, %p78
      %p80 = scmp.ne.s32.totalorder %s72, %s74
      %p81 = scmp.eq.s32.totalorder %s22, 1
      %p82 = por %p80, %p81
      %p83 = scmp.ne.s32.totalorder %s74, %s75
      %p84 = scmp.eq.s32.totalorder %s22, 0
      %p85 = por %p83, %p84
      %p86 = scmp.ne.s32.totalorder %s74, %s75
      %p87 = scmp.eq.s32.totalorder %s23, 1
      %p88 = por %p86, %p87
      %p90 = scmp.ne.s32.totalorder %s75, %s89
      %p91 = scmp.eq.s32.totalorder %s23, 0
      %p92 = por %p90, %p91
      %s94 = sadd.s32 %s93, 1
      %p97 = scmp.eq.s32.totalorder %s17, 1
      %p98 = scmp.ne.s32.totalorder %s93, %s95
      %p99 = scmp.eq.s32.totalorder %s17, 0
      %p100 = por %p98, %p99
      %p101 = scmp.ne.s32.totalorder %s93, %s95
      %p102 = scmp.eq.s32.totalorder %s22, 1
      %p103 = por %p101, %p102
      %p104 = scmp.ne.s32.totalorder %s95, %s96
      %p105 = scmp.eq.s32.totalorder %s22, 0
      %p106 = por %p104, %p105
      %p107 = scmp.ne.s32.totalorder %s95, %s96
      %p108 = scmp.eq.s32.totalorder %s23, 1
      %p109 = por %p107, %p108
      %p111 = scmp.ne.s32.totalorder %s96, %s110
      %p112 = scmp.eq.s32.totalorder %s23, 0
      %p113 = por %p111, %p112
      %s115 = sadd.s32 %s114, 1
      %p118 = scmp.eq.s32.totalorder %s17, 1
      %p119 = scmp.ne.s32.totalorder %s114, %s116
      %p120 = scmp.eq.s32.totalorder %s17, 0
      %p121 = por %p119, %p120
      %p122 = scmp.ne.s32.totalorder %s114, %s116
      %p123 = scmp.eq.s32.totalorder %s22, 1
      %p124 = por %p122, %p123
      %p125 = scmp.ne.s32.totalorder %s116, %s117
      %p126 = scmp.eq.s32.totalorder %s22, 0
      %p127 = por %p125, %p126
      %p128 = scmp.ne.s32.totalorder %s116, %s117
      %p129 = scmp.eq.s32.totalorder %s23, 1
      %p130 = por %p128, %p129
      %p132 = scmp.ne.s32.totalorder %s117, %s131
      %p133 = scmp.eq.s32.totalorder %s23, 0
      %p134 = por %p132, %p133
      %s136 = sadd.s32 %s135, 1
      %p139 = scmp.eq.s32.totalorder %s17, 1
      %p140 = scmp.ne.s32.totalorder %s135, %s137
      %p141 = scmp.eq.s32.totalorder %s17, 0
      %p142 = por %p140, %p141
      %p143 = scmp.ne.s32.totalorder %s135, %s137
      %p144 = scmp.eq.s32.totalorder %s22, 1
      %p145 = por %p143, %p144
      %p146 = scmp.ne.s32.totalorder %s137, %s138
      %p147 = scmp.eq.s32.totalorder %s22, 0
      %p148 = por %p146, %p147
      %p149 = scmp.ne.s32.totalorder %s137, %s138
      %p150 = scmp.eq.s32.totalorder %s23, 1
      %p151 = por %p149, %p150
      %p153 = scmp.ne.s32.totalorder %s138, %s152
      %p154 = scmp.eq.s32.totalorder %s23, 0
      %p155 = por %p153, %p154
      %s157 = sadd.s32 %s156, 1
      %p160 = scmp.eq.s32.totalorder %s17, 1
      %p161 = scmp.ne.s32.totalorder %s156, %s158
      %p162 = scmp.eq.s32.totalorder %s17, 0
      %p163 = por %p161, %p162
      %p164 = scmp.ne.s32.totalorder %s156, %s158
      %p165 = scmp.eq.s32.totalorder %s22, 1
      %p166 = por %p164, %p165
      %p167 = scmp.ne.s32.totalorder %s158, %s159
      %p168 = scmp.eq.s32.totalorder %s22, 0
      %p169 = por %p167, %p168
      %p170 = scmp.ne.s32.totalorder %s158, %s159
      %p171 = scmp.eq.s32.totalorder %s23, 1
      %p172 = por %p170, %p171
      %p174 = scmp.ne.s32.totalorder %s159, %s173
      %p175 = scmp.eq.s32.totalorder %s23, 0
      %p176 = por %p174, %p175
      %s177 = ssub.s32 %s17, %s24
      %p178 = scmp.eq.s32.totalorder %s177, 0
      %s180 = sadd.s32 %s179, 1
      %s181 = scalar_select %p178, %s179, %s180
      %p184 = pneg %p178
      %p185 = scmp.eq.s32.totalorder %s17, 1
      %p186 = por %p184, %p185
      %p187 = scmp.ne.s32.totalorder %s179, %s182
      %p188 = scmp.eq.s32.totalorder %s17, 0
      %p189 = por %p187, %p188
      %p190 = scmp.ne.s32.totalorder %s179, %s182
      %p191 = scmp.eq.s32.totalorder %s22, 1
      %p192 = por %p190, %p191
      %p193 = scmp.ne.s32.totalorder %s182, %s183
      %p194 = scmp.eq.s32.totalorder %s22, 0
      %p195 = por %p193, %p194
      %p196 = scmp.ne.s32.totalorder %s182, %s183
      %p197 = scmp.eq.s32.totalorder %s23, 1
      %p198 = por %p196, %p197
      %p200 = scmp.ne.s32.totalorder %s183, %s199
      %p201 = scmp.eq.s32.totalorder %s23, 0
      %p202 = por %p200, %p201
      %p203 = scmp.le.s32.totalorder 1, %s17
      %p204 = scmp.lt.s32.totalorder %s17, 3
      %p205 = pnand %p203, %p204
      %p206 = pneg %p205
      // Predicated region
      $region9: #{tpu_custom_call.1} parent=5 // pred_check
        _
      $region10: #{tpu_custom_call.1} parent=5 // pred_check_branch
        %208 = sbr.rel (%p205) target = $region12
      $region11: #{tpu_custom_call.1} parent=5 // pred_region
        %s209 = ssub.s32 %s17, 1
        // Predicated region
        $region13: #{tpu_custom_call.1} parent=11 // pred_check
          %p210 = pneg %p64
        $region14: #{tpu_custom_call.1} parent=11 // pred_check_branch
          %212 = sbr.rel (%p210) target = $region16
        $region15: #{tpu_custom_call.1} parent=11 // pred_region
          _
        $region16: #{tpu_custom_call.1} parent=11 // pred_fallthru
          _
        // Predicated region
        $region17: #{tpu_custom_call.1} parent=11 // pred_check
          %p213 = pneg %p85
        $region18: #{tpu_custom_call.1} parent=11 // pred_check_branch
          %215 = sbr.rel (%p213) target = $region20
        $region19: #{tpu_custom_call.1} parent=11 // pred_region
          _
        $region20: #{tpu_custom_call.1} parent=11 // pred_fallthru
          _
        // Predicated region
        $region21: #{tpu_custom_call.1} parent=11 // pred_check
          %p216 = pneg %p106
        $region22: #{tpu_custom_call.1} parent=11 // pred_check_branch
          %218 = sbr.rel (%p216) target = $region24
        $region23: #{tpu_custom_call.1} parent=11 // pred_region
          _
        $region24: #{tpu_custom_call.1} parent=11 // pred_fallthru
          _
        // Predicated region
        $region25: #{tpu_custom_call.1} parent=11 // pred_check
          %p219 = pneg %p127
        $region26: #{tpu_custom_call.1} parent=11 // pred_check_branch
          %221 = sbr.rel (%p219) target = $region28
        $region27: #{tpu_custom_call.1} parent=11 // pred_region
          _
        $region28: #{tpu_custom_call.1} parent=11 // pred_fallthru
          _
        // Predicated region
        $region29: #{tpu_custom_call.1} parent=11 // pred_check
          %p222 = pneg %p148
        $region30: #{tpu_custom_call.1} parent=11 // pred_check_branch
          %224 = sbr.rel (%p222) target = $region32
        $region31: #{tpu_custom_call.1} parent=11 // pred_region
          _
        $region32: #{tpu_custom_call.1} parent=11 // pred_fallthru
          _
        // Predicated region
        $region33: #{tpu_custom_call.1} parent=11 // pred_check
          %p225 = pneg %p169
        $region34: #{tpu_custom_call.1} parent=11 // pred_check_branch
          %227 = sbr.rel (%p225) target = $region36
        $region35: #{tpu_custom_call.1} parent=11 // pred_region
          %s229 = ssub.s32 16384, 16384
          %230 = vsyncadd [#allocation3], %s229
          %s231 = sshll.u32 [#allocation2], 4
          %s232 = int_to_ptr.vmem [resolvable:$true] %s231
          %237 = dma.hbm_to_vmem [thread:$0]  %s6, 16384, %s232, [#allocation3], 512, 512, 32
        $region36: #{tpu_custom_call.1} parent=11 // pred_fallthru
          _
      $region12: #{tpu_custom_call.1} parent=5 // pred_fallthru
        _
      %p238 = scmp.lt.s32.totalorder %s17, 2
      // Predicated region
      $region37: #{tpu_custom_call.1} parent=5 // pred_check
        %p239 = pneg %p238
      $region38: #{tpu_custom_call.1} parent=5 // pred_check_branch
        %241 = sbr.rel (%p239) target = $region40
      $region39: #{tpu_custom_call.1} parent=5 // pred_region
        // Predicated region
        $region41: #{tpu_custom_call.1} parent=39 // pred_check
          %p242 = pneg %p37
        $region42: #{tpu_custom_call.1} parent=39 // pred_check_branch
          %244 = sbr.rel (%p242) target = $region44
        $region43: #{tpu_custom_call.1} parent=39 // pred_region
          %p245 = scmp.lt.s32.totalorder %s17, 1
          %s246 = scalar_select %p245, %s17, 1
          %s247 = smul.addr %s246, 10
          %s248 = smul.addr %s247, 4
          %s249 = scalar_lea.vmem %s0, %s248
        $region44: #{tpu_custom_call.1} parent=39 // pred_fallthru
          _
      $region40: #{tpu_custom_call.1} parent=5 // pred_fallthru
        _
      %p250 = scmp.le.s32.totalorder 1, %s17
      %p251 = scmp.lt.s32.totalorder %s17, 3
      %p252 = pnand %p250, %p251
      %p253 = pneg %p252
      // Predicated region
      $region45: #{tpu_custom_call.1} parent=5 // pred_check
        _
      $region46: #{tpu_custom_call.1} parent=5 // pred_check_branch
        %255 = sbr.rel (%p252) target = $region48
      $region47: #{tpu_custom_call.1} parent=5 // pred_region
        %s256 = ssub.s32 %s17, 1
        // Predicated region
        $region49: #{tpu_custom_call.1} parent=47 // pred_check
          %p257 = pneg %p169
        $region50: #{tpu_custom_call.1} parent=47 // pred_check_branch
          %259 = sbr.rel (%p257) target = $region52
        $region51: #{tpu_custom_call.1} parent=47 // pred_region
          %260 = dma.done [#allocation3], 16384
        $region52: #{tpu_custom_call.1} parent=47 // pred_fallthru
          _
        %p261 = scmp.lt.s32.totalorder %s22, 1
        %s262 = scalar_select %p261, %s22, 1
        %s263 = smul.addr %s262, 10
        %s264 = smul.addr %s263, 4
        %s265 = scalar_lea.vmem %s0, %s264
        %p266 = pneg %p43
        %p267 = pneg %p40
        %p268 = pneg %p64
        %p269 = pneg %p61
        %p270 = pneg %p85
        %p271 = pneg %p82
        %p272 = pneg %p106
        %p273 = pneg %p103
        %p274 = pneg %p127
        %p275 = pneg %p124
        %p276 = pneg %p148
        %p277 = pneg %p145
        %p278 = pneg %p169
        %p279 = pneg %p166
        %p280 = pneg %p195
        %p281 = pneg %p192
        %s282 = sand.u32 %s182, 1
        %s283 = scalar_lea.sflag [#allocation4], %s282
        %s284 = sand.u32 %s182, 1
        %s285 = smul.addr %s284, 256
        %s286 = scalar_lea.vmem [#allocation5], %s285
        %p287 = scmp.lt.s32.totalorder %s22, 1
        %s288 = scalar_select %p287, %s22, 1
        %s289 = smul.addr %s288, 10
        %s290 = smul.addr %s289, 4
        %s291 = scalar_lea.vmem %s0, %s290
        %v293 = vld [vmem:[%s291] sm:$0xff]
        %v294 = vld [vmem:[%s291 + $0x8] sm:$0xff]
        %v295 = vld [vmem:[%s291 + $0x10] sm:$0xff]
        %v296 = vld [vmem:[%s291 + $0x18] sm:$0xff]
        %v297 = vld [vmem:[%s291 + $0x20] sm:$0x33]
        %v298 = vld [vmem:[%s1] sm:$0xf]
        %v299 = vld [vmem:[%s1 + $0x4] sm:$0xf]
        %v300 = vld [vmem:[%s1 + $0x8] sm:$0xf]
        %v301 = vld [vmem:[%s1 + $0xc] sm:$0xf]
        %v302 = vld [vmem:[%s2] sm:$0xff]
        %v303 = vld [vmem:[%s2 + $0x8] sm:$0xff]
        %v304 = vld [vmem:[%s2 + $0x10] sm:$0xff]
        %v305 = vld [vmem:[%s2 + $0x18] sm:$0xff]
        %307 = vset.pattern.permute.xlu0 0
        %308 = vperm.xlu0 %307, %v302
        %v309 = vpop.permute.xlu0 %308
        %312 = vset.pattern.permute.xlu0 0
        %313 = vperm.xlu0 %312, %v303
        %v314 = vpop.permute.xlu0 %313
        %317 = vset.pattern.permute.xlu0 0
        %318 = vperm.xlu0 %317, %v304
        %v319 = vpop.permute.xlu0 %318
        %322 = vset.pattern.permute.xlu0 0
        %323 = vperm.xlu0 %322, %v305
        %v324 = vpop.permute.xlu0 %323
        %v330 = vunpack.c.l.b16 %v298
        %v331 = vunpack.c.l.b16 %v299
        %v332 = vunpack.c.l.b16 %v300
        %v333 = vunpack.c.l.b16 %v301
        %v334 = vpack.c.b16 %v331, %v330
        %v335 = vpack.c.b16 %v333, %v332
        %v341 = vunpack.c.l.b16 %v293
        %v342 = vunpack.c.h.b16 %v293
        %v343 = vunpack.c.l.b16 %v294
        %v344 = vunpack.c.h.b16 %v294
        %v345 = vunpack.c.l.b16 %v295
        %v346 = vunpack.c.h.b16 %v295
        %v347 = vunpack.c.l.b16 %v296
        %v348 = vunpack.c.h.b16 %v296
        %v349 = vunpack.c.l.b16 %v297
        %v350 = vunpack.c.h.b16 %v297
        %v351 = vpack.c.b16 %v343, %v341
        %v352 = vpack.c.b16 %v344, %v342
        %v353 = vpack.c.b16 %v347, %v345
        %v354 = vpack.c.b16 %v348, %v346
        %v355 = vpack.c.b16 %v349, %v349
        %v356 = vpack.c.b16 %v350, %v350
        %vm361 = vcmask 293888
        %v363 = vsel %vm361, %v334, 0
        %v366 = vsel %vm361, %v335, 0
        %vm368 = vcmask 1041408
        %v370 = vsel %vm368, %v355, 0
        %v373 = vsel %vm368, %v356, 0
        %375 = vmatprep.subr.bf16.mxu0 %v352
        %376 = vmatpush1.bf16.msra.mxu0 %v351
        %377 = vmatprep.subr.bf16.mxu0 %v354
        %378 = vmatpush1.bf16.msra.mxu0 %v353
        %379 = vmatprep.subr.bf16.mxu0 %v373
        %380 = vmatpush1.bf16.msra.mxu0 %v370
        %381 = vmatprep.subr.bf16.mxu0 0
        %382 = vmatpush1.bf16.msra.mxu0 0
        %383 = vmatprep.subr.bf16.mxu0 0
        %384 = vmatpush1.bf16.msra.mxu0 0
        %385 = vmatprep.subr.bf16.mxu0 0
        %386 = vmatpush1.bf16.msra.mxu0 0
        %387 = vmatprep.subr.bf16.mxu0 0
        %388 = vmatpush1.bf16.msra.mxu0 0
        %389 = vmatprep.subr.bf16.mxu0 0
        %390 = vmatpush1.bf16.msra.mxu0 0
        %391 = vmatprep.subr.bf16.mxu0 0
        %392 = vmatpush1.bf16.msra.mxu0 0
        %393 = vmatprep.subr.bf16.mxu0 0
        %394 = vmatpush1.bf16.msra.mxu0 0
        %395 = vmatprep.subr.bf16.mxu0 0
        %396 = vmatpush1.bf16.msra.mxu0 0
        %397 = vmatprep.subr.bf16.mxu0 0
        %398 = vmatpush1.bf16.msra.mxu0 0
        %399 = vmatprep.subr.bf16.mxu0 0
        %400 = vmatpush1.bf16.msra.mxu0 0
        %401 = vmatprep.subr.bf16.mxu0 0
        %402 = vmatpush1.bf16.msra.mxu0 0
        %403 = vmatprep.subr.bf16.mxu0 0
        %404 = vmatpush1.bf16.msra.mxu0 0
        %405 = vmatprep.subr.bf16.mxu0 0
        %406 = vmatpush1.bf16.msra.mxu0 0
        %407 = vmatprep.mubr.bf16.mxu0 0
        %408 = vmatmul.mubr.bf16.gmra.mrb[0].mxu0 %v363
        %v409 = vpop.f32.mrb[0].mxu0
        %v410 = vadd.f32 %v309, %v409
        %v411 = vpop.f32.mrb[0].mxu0
        %v412 = vadd.f32 %v309, %v411
        %v413 = vpop.f32.mrb[0].mxu0
        %v414 = vadd.f32 %v314, %v413
        %v415 = vpop.f32.mrb[0].mxu0
        %v416 = vadd.f32 %v314, %v415
        %417 = vmatprep.mubr.bf16.mxu0 0
        %418 = vmatmul.mubr.bf16.gmra.mrb[0].mxu0 %v366
        %v419 = vpop.f32.mrb[0].mxu0
        %v420 = vadd.f32 %v319, %v419
        %v421 = vpop.f32.mrb[0].mxu0
        %v422 = vadd.f32 %v319, %v421
        %v423 = vpop.f32.mrb[0].mxu0
        %v424 = vadd.f32 %v324, %v423
        %v425 = vpop.f32.mrb[0].mxu0
        %v426 = vadd.f32 %v324, %v425
        %427 = vdwg.mxu0
        %v428 = vadd.f32 %v410, %v412
        %429 = vadd.xlane.f32.xlu0 %v428
        %v430 = vpop.xlane.xlu0 %429
        %v431 = vadd.f32 %v414, %v416
        %432 = vadd.xlane.f32.xlu0 %v431
        %v433 = vpop.xlane.xlu0 %432
        %v434 = vadd.f32 %v420, %v422
        %435 = vadd.xlane.f32.xlu0 %v434
        %v436 = vpop.xlane.xlu0 %435
        %v437 = vadd.f32 %v424, %v426
        %438 = vadd.xlane.f32.xlu0 %v437
        %v439 = vpop.xlane.xlu0 %438
        %v440 = vld [vmem:[%s5] sm:$0xff]
        %v441 = vld [vmem:[%s5 + $0x8] sm:$0xff]
        %v442 = vld [vmem:[%s5 + $0x10] sm:$0xff]
        %v443 = vld [vmem:[%s5 + $0x18] sm:$0xff]
        %vm444 = vcmask 261120
        %v446 = vsel %vm444, %v440, 0
        %v449 = vsel %vm444, %v441, 0
        %v452 = vsel %vm444, %v442, 0
        %v455 = vsel %vm444, %v443, 0
        %457 = vmatprep.subr.mxu0 0.0
        %458 = vmatpush1.msra.mxu0 %v430
        %459 = vmatprep.subr.mxu0 0.0
        %460 = vmatpush1.msra.mxu0 %v433
        %461 = vmatprep.subr.mxu0 0.0
        %462 = vmatpush1.msra.mxu0 %v436
        %463 = vmatprep.subr.mxu0 0.0
        %464 = vmatpush1.msra.mxu0 %v439
        %465 = vmatprep.subr.mxu0 0.0
        %466 = vmatpush1.msra.mxu0 0.0
        %467 = vmatprep.subr.mxu0 0.0
        %468 = vmatpush1.msra.mxu0 0.0
        %469 = vmatprep.subr.mxu0 0.0
        %470 = vmatpush1.msra.mxu0 0.0
        %471 = vmatprep.subr.mxu0 0.0
        %472 = vmatpush1.msra.mxu0 0.0
        %473 = vmatprep.subr.mxu0 0.0
        %474 = vmatpush1.msra.mxu0 0.0
        %475 = vmatprep.subr.mxu0 0.0
        %476 = vmatpush1.msra.mxu0 0.0
        %477 = vmatprep.subr.mxu0 0.0
        %478 = vmatpush1.msra.mxu0 0.0
        %479 = vmatprep.subr.mxu0 0.0
        %480 = vmatpush1.msra.mxu0 0.0
        %481 = vmatprep.subr.mxu0 0.0
        %482 = vmatpush1.msra.mxu0 0.0
        %483 = vmatprep.subr.mxu0 0.0
        %484 = vmatpush1.msra.mxu0 0.0
        %485 = vmatprep.subr.mxu0 0.0
        %486 = vmatpush1.msra.mxu0 0.0
        %487 = vmatprep.subr.mxu0 0.0
        %488 = vmatpush1.msra.mxu0 0.0
        %489 = vmatprep.subr.mxu0 0.0
        %490 = vmatpush1.msra.mxu0 0.0
        %491 = vmatprep.subr.mxu0 0.0
        %492 = vmatpush1.msra.mxu0 0.0
        %493 = vmatprep.subr.mxu0 0.0
        %494 = vmatpush1.msra.mxu0 0.0
        %495 = vmatprep.subr.mxu0 0.0
        %496 = vmatpush1.msra.mxu0 0.0
        %497 = vmatprep.subr.mxu0 0.0
        %498 = vmatpush1.msra.mxu0 0.0
        %499 = vmatprep.subr.mxu0 0.0
        %500 = vmatpush1.msra.mxu0 0.0
        %501 = vmatprep.subr.mxu0 0.0
        %502 = vmatpush1.msra.mxu0 0.0
        %503 = vmatprep.subr.mxu0 0.0
        %504 = vmatpush1.msra.mxu0 0.0
        %505 = vmatprep.subr.mxu0 0.0
        %506 = vmatpush1.msra.mxu0 0.0
        %507 = vmatprep.subr.mxu0 0.0
        %508 = vmatpush1.msra.mxu0 0.0
        %509 = vmatprep.subr.mxu0 0.0
        %510 = vmatpush1.msra.mxu0 0.0
        %511 = vmatprep.subr.mxu0 0.0
        %512 = vmatpush1.msra.mxu0 0.0
        %513 = vmatprep.subr.mxu0 0.0
        %514 = vmatpush1.msra.mxu0 0.0
        %515 = vmatprep.subr.mxu0 0.0
        %516 = vmatpush1.msra.mxu0 0.0
        %517 = vmatprep.subr.mxu0 0.0
        %518 = vmatpush1.msra.mxu0 0.0
        %519 = vmatprep.subr.mxu0 0.0
        %520 = vmatpush1.msra.mxu0 0.0
        %521 = vmatprep.mubr.f32.mxu0 0.0
        %522 = vmatmul.mubr.f32.gmra.mrb[0].mxu0 %v446
        %v523 = vpop.f32.mrb[0].mxu0
        %v524 = vadd.f32 0.0, %v523
        %v525 = vpop.f32.mrb[0].mxu0
        %526 = vmatprep.mubr.f32.mxu0 0.0
        %527 = vmatmul.mubr.f32.gmra.mrb[0].mxu0 %v449
        %v528 = vpop.f32.mrb[0].mxu0
        %v529 = vadd.f32 0.0, %v528
        %v530 = vpop.f32.mrb[0].mxu0
        %531 = vmatprep.mubr.f32.mxu0 0.0
        %532 = vmatmul.mubr.f32.gmra.mrb[0].mxu0 %v452
        %v533 = vpop.f32.mrb[0].mxu0
        %v534 = vadd.f32 0.0, %v533
        %v535 = vpop.f32.mrb[0].mxu0
        %536 = vmatprep.mubr.f32.mxu0 0.0
        %537 = vmatmul.mubr.f32.gmra.mrb[0].mxu0 %v455
        %v538 = vpop.f32.mrb[0].mxu0
        %v539 = vadd.f32 0.0, %v538
        %v540 = vpop.f32.mrb[0].mxu0
        %541 = vdwg.mxu0
        %v542 = vmul.f32 %v524, 0.00390625
        %v543 = vmul.f32 %v529, 0.00390625
        %v544 = vmul.f32 %v534, 0.00390625
        %v545 = vmul.f32 %v539, 0.00390625
        %547 = vset.pattern.permute.xlu0 0
        %548 = vperm.xlu0 %547, %v542
        %v549 = vpop.permute.xlu0 %548
        %552 = vset.pattern.permute.xlu0 0
        %553 = vperm.xlu0 %552, %v543
        %v554 = vpop.permute.xlu0 %553
        %557 = vset.pattern.permute.xlu0 0
        %558 = vperm.xlu0 %557, %v544
        %v559 = vpop.permute.xlu0 %558
        %562 = vset.pattern.permute.xlu0 0
        %563 = vperm.xlu0 %562, %v545
        %v564 = vpop.permute.xlu0 %563
        %v566 = vsub.f32 %v410, %v549
        %v567 = vsub.f32 %v412, %v549
        %v568 = vsub.f32 %v414, %v554
        %v569 = vsub.f32 %v416, %v554
        %v570 = vsub.f32 %v420, %v559
        %v571 = vsub.f32 %v422, %v559
        %v572 = vsub.f32 %v424, %v564
        %v573 = vsub.f32 %v426, %v564
        %v574 = vmul.f32 %v566, %v566
        %v575 = vmul.f32 %v567, %v567
        %v576 = vmul.f32 %v568, %v568
        %v577 = vmul.f32 %v569, %v569
        %v578 = vmul.f32 %v570, %v570
        %v579 = vmul.f32 %v571, %v571
        %v580 = vmul.f32 %v572, %v572
        %v581 = vmul.f32 %v573, %v573
        %v582 = vadd.f32 %v574, %v575
        %583 = vadd.xlane.f32.xlu0 %v582
        %v584 = vpop.xlane.xlu0 %583
        %v585 = vadd.f32 %v576, %v577
        %586 = vadd.xlane.f32.xlu0 %v585
        %v587 = vpop.xlane.xlu0 %586
        %v588 = vadd.f32 %v578, %v579
        %589 = vadd.xlane.f32.xlu0 %v588
        %v590 = vpop.xlane.xlu0 %589
        %v591 = vadd.f32 %v580, %v581
        %592 = vadd.xlane.f32.xlu0 %v591
        %v593 = vpop.xlane.xlu0 %592
        %594 = vmatprep.subr.mxu0 0.0
        %595 = vmatpush1.msra.mxu0 %v584
        %596 = vmatprep.subr.mxu0 0.0
        %597 = vmatpush1.msra.mxu0 %v587
        %598 = vmatprep.subr.mxu0 0.0
        %599 = vmatpush1.msra.mxu0 %v590
        %600 = vmatprep.subr.mxu0 0.0
        %601 = vmatpush1.msra.mxu0 %v593
        %602 = vmatprep.subr.mxu0 0.0
        %603 = vmatpush1.msra.mxu0 0.0
        %604 = vmatprep.subr.mxu0 0.0
        %605 = vmatpush1.msra.mxu0 0.0
        %606 = vmatprep.subr.mxu0 0.0
        %607 = vmatpush1.msra.mxu0 0.0
        %608 = vmatprep.subr.mxu0 0.0
        %609 = vmatpush1.msra.mxu0 0.0
        %610 = vmatprep.subr.mxu0 0.0
        %611 = vmatpush1.msra.mxu0 0.0
        %612 = vmatprep.subr.mxu0 0.0
        %613 = vmatpush1.msra.mxu0 0.0
        %614 = vmatprep.subr.mxu0 0.0
        %615 = vmatpush1.msra.mxu0 0.0
        %616 = vmatprep.subr.mxu0 0.0
        %617 = vmatpush1.msra.mxu0 0.0
        %618 = vmatprep.subr.mxu0 0.0
        %619 = vmatpush1.msra.mxu0 0.0
        %620 = vmatprep.subr.mxu0 0.0
        %621 = vmatpush1.msra.mxu0 0.0
        %622 = vmatprep.subr.mxu0 0.0
        %623 = vmatpush1.msra.mxu0 0.0
        %624 = vmatprep.subr.mxu0 0.0
        %625 = vmatpush1.msra.mxu0 0.0
        %626 = vmatprep.subr.mxu0 0.0
        %627 = vmatpush1.msra.mxu0 0.0
        %628 = vmatprep.subr.mxu0 0.0
        %629 = vmatpush1.msra.mxu0 0.0
        %630 = vmatprep.subr.mxu0 0.0
        %631 = vmatpush1.msra.mxu0 0.0
        %632 = vmatprep.subr.mxu0 0.0
        %633 = vmatpush1.msra.mxu0 0.0
        %634 = vmatprep.subr.mxu0 0.0
        %635 = vmatpush1.msra.mxu0 0.0
        %636 = vmatprep.subr.mxu0 0.0
        %637 = vmatpush1.msra.mxu0 0.0
        %638 = vmatprep.subr.mxu0 0.0
        %639 = vmatpush1.msra.mxu0 0.0
        %640 = vmatprep.subr.mxu0 0.0
        %641 = vmatpush1.msra.mxu0 0.0
        %642 = vmatprep.subr.mxu0 0.0
        %643 = vmatpush1.msra.mxu0 0.0
        %644 = vmatprep.subr.mxu0 0.0
        %645 = vmatpush1.msra.mxu0 0.0
        %646 = vmatprep.subr.mxu0 0.0
        %647 = vmatpush1.msra.mxu0 0.0
        %648 = vmatprep.subr.mxu0 0.0
        %649 = vmatpush1.msra.mxu0 0.0
        %650 = vmatprep.subr.mxu0 0.0
        %651 = vmatpush1.msra.mxu0 0.0
        %652 = vmatprep.subr.mxu0 0.0
        %653 = vmatpush1.msra.mxu0 0.0
        %654 = vmatprep.subr.mxu0 0.0
        %655 = vmatpush1.msra.mxu0 0.0
        %656 = vmatprep.subr.mxu0 0.0
        %657 = vmatpush1.msra.mxu0 0.0
        %658 = vmatprep.mubr.f32.mxu0 0.0
        %659 = vmatmul.mubr.f32.gmra.mrb[0].mxu0 %v446
        %v660 = vpop.f32.mrb[0].mxu0
        %v661 = vadd.f32 0.0, %v660
        %v662 = vpop.f32.mrb[0].mxu0
        %663 = vmatprep.mubr.f32.mxu0 0.0
        %664 = vmatmul.mubr.f32.gmra.mrb[0].mxu0 %v449
        %v665 = vpop.f32.mrb[0].mxu0
        %v666 = vadd.f32 0.0, %v665
        %v667 = vpop.f32.mrb[0].mxu0
        %668 = vmatprep.mubr.f32.mxu0 0.0
        %669 = vmatmul.mubr.f32.gmra.mrb[0].mxu0 %v452
        %v670 = vpop.f32.mrb[0].mxu0
        %v671 = vadd.f32 0.0, %v670
        %v672 = vpop.f32.mrb[0].mxu0
        %673 = vmatprep.mubr.f32.mxu0 0.0
        %674 = vmatmul.mubr.f32.gmra.mrb[0].mxu0 %v455
        %v675 = vpop.f32.mrb[0].mxu0
        %v676 = vadd.f32 0.0, %v675
        %v677 = vpop.f32.mrb[0].mxu0
        %678 = vdwg.mxu0
        %v679 = vmul.f32 %v661, 0.00390625
        %v680 = vmul.f32 %v666, 0.00390625
        %v681 = vmul.f32 %v671, 0.00390625
        %v682 = vmul.f32 %v676, 0.00390625
        %v683 = vadd.f32 %v679, 1e-05
        %v684 = vadd.f32 %v680, 1e-05
        %v685 = vadd.f32 %v681, 1e-05
        %v686 = vadd.f32 %v682, 1e-05
        %v687 = vrsqrt.pop %v683
        %v688 = vrsqrt.pop %v684
        %v689 = vrsqrt.pop %v685
        %v690 = vrsqrt.pop %v686
        %v691 = vld [vmem:[%s3] sm:$0xff]
        %v692 = vld [vmem:[%s3 + $0x8] sm:$0xff]
        %v693 = vld [vmem:[%s3 + $0x10] sm:$0xff]
        %v694 = vld [vmem:[%s3 + $0x18] sm:$0xff]
        %v695 = vmul.f32 %v687, %v691
        %v696 = vmul.f32 %v688, %v692
        %v697 = vmul.f32 %v689, %v693
        %v698 = vmul.f32 %v690, %v694
        %700 = vset.pattern.permute.xlu0 0
        %701 = vperm.xlu0 %700, %v695
        %v702 = vpop.permute.xlu0 %701
        %705 = vset.pattern.permute.xlu0 0
        %706 = vperm.xlu0 %705, %v696
        %v707 = vpop.permute.xlu0 %706
        %710 = vset.pattern.permute.xlu0 0
        %711 = vperm.xlu0 %710, %v697
        %v712 = vpop.permute.xlu0 %711
        %715 = vset.pattern.permute.xlu0 0
        %716 = vperm.xlu0 %715, %v698
        %v717 = vpop.permute.xlu0 %716
        %v719 = vmul.f32 %v566, %v702
        %v720 = vmul.f32 %v567, %v702
        %v721 = vmul.f32 %v568, %v707
        %v722 = vmul.f32 %v569, %v707
        %v723 = vmul.f32 %v570, %v712
        %v724 = vmul.f32 %v571, %v712
        %v725 = vmul.f32 %v572, %v717
        %v726 = vmul.f32 %v573, %v717
        %v727 = vld [vmem:[%s4] sm:$0xff]
        %v728 = vld [vmem:[%s4 + $0x8] sm:$0xff]
        %v729 = vld [vmem:[%s4 + $0x10] sm:$0xff]
        %v730 = vld [vmem:[%s4 + $0x18] sm:$0xff]
        %732 = vset.pattern.permute.xlu0 0
        %733 = vperm.xlu0 %732, %v727
        %v734 = vpop.permute.xlu0 %733
        %737 = vset.pattern.permute.xlu0 0
        %738 = vperm.xlu0 %737, %v728
        %v739 = vpop.permute.xlu0 %738
        %742 = vset.pattern.permute.xlu0 0
        %743 = vperm.xlu0 %742, %v729
        %v744 = vpop.permute.xlu0 %743
        %747 = vset.pattern.permute.xlu0 0
        %748 = vperm.xlu0 %747, %v730
        %v749 = vpop.permute.xlu0 %748
        %v751 = vadd.f32 %v719, %v734
        %v752 = vadd.f32 %v720, %v734
        %v753 = vadd.f32 %v721, %v739
        %v754 = vadd.f32 %v722, %v739
        %v755 = vadd.f32 %v723, %v744
        %v756 = vadd.f32 %v724, %v744
        %v757 = vadd.f32 %v725, %v749
        %v758 = vadd.f32 %v726, %v749
        %v759 = vmax.f32 %v751, 0.0
        %v760 = vmax.f32 %v752, 0.0
        %v761 = vmax.f32 %v753, 0.0
        %v762 = vmax.f32 %v754, 0.0
        %v763 = vmax.f32 %v755, 0.0
        %v764 = vmax.f32 %v756, 0.0
        %v765 = vmax.f32 %v757, 0.0
        %v766 = vmax.f32 %v758, 0.0
        %v767 = vpack.c.bf16 %v761, %v759
        %v768 = vpack.c.bf16 %v762, %v760
        %v769 = vpack.c.bf16 %v765, %v763
        %v770 = vpack.c.bf16 %v766, %v764
        %v771 = vld [vmem:[#allocation2] sm:$0xff]
        %v772 = vld [vmem:[#allocation2 + $0x8] sm:$0xff]
        %v773 = vld [vmem:[#allocation2 + $0x10] sm:$0xff]
        %v774 = vld [vmem:[#allocation2 + $0x18] sm:$0xff]
        %v775 = vld [vmem:[#allocation2 + $0x20] sm:$0xff]
        %v776 = vld [vmem:[#allocation2 + $0x28] sm:$0xff]
        %v777 = vld [vmem:[#allocation2 + $0x30] sm:$0xff]
        %v778 = vld [vmem:[#allocation2 + $0x38] sm:$0xff]
        %v779 = vld [vmem:[#allocation2 + $0x40] sm:$0xff]
        %v780 = vld [vmem:[#allocation2 + $0x48] sm:$0xff]
        %v781 = vld [vmem:[#allocation2 + $0x50] sm:$0xff]
        %v782 = vld [vmem:[#allocation2 + $0x58] sm:$0xff]
        %v783 = vld [vmem:[#allocation2 + $0x60] sm:$0xff]
        %v784 = vld [vmem:[#allocation2 + $0x68] sm:$0xff]
        %v785 = vld [vmem:[#allocation2 + $0x70] sm:$0xff]
        %v786 = vld [vmem:[#allocation2 + $0x78] sm:$0xff]
        %v787 = vld [vmem:[#allocation2 + $0x80] sm:$0xff]
        %v788 = vld [vmem:[#allocation2 + $0x88] sm:$0xff]
        %v789 = vld [vmem:[#allocation2 + $0x90] sm:$0xff]
        %v790 = vld [vmem:[#allocation2 + $0x98] sm:$0xff]
        %v791 = vld [vmem:[#allocation2 + $0xa0] sm:$0xff]
        %v792 = vld [vmem:[#allocation2 + $0xa8] sm:$0xff]
        %v793 = vld [vmem:[#allocation2 + $0xb0] sm:$0xff]
        %v794 = vld [vmem:[#allocation2 + $0xb8] sm:$0xff]
        %v795 = vld [vmem:[#allocation2 + $0xc0] sm:$0xff]
        %v796 = vld [vmem:[#allocation2 + $0xc8] sm:$0xff]
        %v797 = vld [vmem:[#allocation2 + $0xd0] sm:$0xff]
        %v798 = vld [vmem:[#allocation2 + $0xd8] sm:$0xff]
        %v799 = vld [vmem:[#allocation2 + $0xe0] sm:$0xff]
        %v800 = vld [vmem:[#allocation2 + $0xe8] sm:$0xff]
        %v801 = vld [vmem:[#allocation2 + $0xf0] sm:$0xff]
        %v802 = vld [vmem:[#allocation2 + $0xf8] sm:$0xff]
        %v803 = vld [vmem:[#allocation2 + $0x100] sm:$0xff]
        %v804 = vld [vmem:[#allocation2 + $0x108] sm:$0xff]
        %v805 = vld [vmem:[#allocation2 + $0x110] sm:$0xff]
        %v806 = vld [vmem:[#allocation2 + $0x118] sm:$0xff]
        %v807 = vld [vmem:[#allocation2 + $0x120] sm:$0xff]
        %v808 = vld [vmem:[#allocation2 + $0x128] sm:$0xff]
        %v809 = vld [vmem:[#allocation2 + $0x130] sm:$0xff]
        %v810 = vld [vmem:[#allocation2 + $0x138] sm:$0xff]
        %v811 = vld [vmem:[#allocation2 + $0x140] sm:$0xff]
        %v812 = vld [vmem:[#allocation2 + $0x148] sm:$0xff]
        %v813 = vld [vmem:[#allocation2 + $0x150] sm:$0xff]
        %v814 = vld [vmem:[#allocation2 + $0x158] sm:$0xff]
        %v815 = vld [vmem:[#allocation2 + $0x160] sm:$0xff]
        %v816 = vld [vmem:[#allocation2 + $0x168] sm:$0xff]
        %v817 = vld [vmem:[#allocation2 + $0x170] sm:$0xff]
        %v818 = vld [vmem:[#allocation2 + $0x178] sm:$0xff]
        %v819 = vld [vmem:[#allocation2 + $0x180] sm:$0xff]
        %v820 = vld [vmem:[#allocation2 + $0x188] sm:$0xff]
        %v821 = vld [vmem:[#allocation2 + $0x190] sm:$0xff]
        %v822 = vld [vmem:[#allocation2 + $0x198] sm:$0xff]
        %v823 = vld [vmem:[#allocation2 + $0x1a0] sm:$0xff]
        %v824 = vld [vmem:[#allocation2 + $0x1a8] sm:$0xff]
        %v825 = vld [vmem:[#allocation2 + $0x1b0] sm:$0xff]
        %v826 = vld [vmem:[#allocation2 + $0x1b8] sm:$0xff]
        %v827 = vld [vmem:[#allocation2 + $0x1c0] sm:$0xff]
        %v828 = vld [vmem:[#allocation2 + $0x1c8] sm:$0xff]
        %v829 = vld [vmem:[#allocation2 + $0x1d0] sm:$0xff]
        %v830 = vld [vmem:[#allocation2 + $0x1d8] sm:$0xff]
        %v831 = vld [vmem:[#allocation2 + $0x1e0] sm:$0xff]
        %v832 = vld [vmem:[#allocation2 + $0x1e8] sm:$0xff]
        %v833 = vld [vmem:[#allocation2 + $0x1f0] sm:$0xff]
        %v834 = vld [vmem:[#allocation2 + $0x1f8] sm:$0xff]
        %v835 = vld [vmem:[#allocation2 + $0x200] sm:$0xff]
        %v836 = vld [vmem:[#allocation2 + $0x208] sm:$0xff]
        %v837 = vld [vmem:[#allocation2 + $0x210] sm:$0xff]
        %v838 = vld [vmem:[#allocation2 + $0x218] sm:$0xff]
        %v839 = vld [vmem:[#allocation2 + $0x220] sm:$0xff]
        %v840 = vld [vmem:[#allocation2 + $0x228] sm:$0xff]
        %v841 = vld [vmem:[#allocation2 + $0x230] sm:$0xff]
        %v842 = vld [vmem:[#allocation2 + $0x238] sm:$0xff]
        %v843 = vld [vmem:[#allocation2 + $0x240] sm:$0xff]
        %v844 = vld [vmem:[#allocation2 + $0x248] sm:$0xff]
        %v845 = vld [vmem:[#allocation2 + $0x250] sm:$0xff]
        %v846 = vld [vmem:[#allocation2 + $0x258] sm:$0xff]
        %v847 = vld [vmem:[#allocation2 + $0x260] sm:$0xff]
        %v848 = vld [vmem:[#allocation2 + $0x268] sm:$0xff]
        %v849 = vld [vmem:[#allocation2 + $0x270] sm:$0xff]
        %v850 = vld [vmem:[#allocation2 + $0x278] sm:$0xff]
        %v851 = vld [vmem:[#allocation2 + $0x280] sm:$0xff]
        %v852 = vld [vmem:[#allocation2 + $0x288] sm:$0xff]
        %v853 = vld [vmem:[#allocation2 + $0x290] sm:$0xff]
        %v854 = vld [vmem:[#allocation2 + $0x298] sm:$0xff]
        %v855 = vld [vmem:[#allocation2 + $0x2a0] sm:$0xff]
        %v856 = vld [vmem:[#allocation2 + $0x2a8] sm:$0xff]
        %v857 = vld [vmem:[#allocation2 + $0x2b0] sm:$0xff]
        %v858 = vld [vmem:[#allocation2 + $0x2b8] sm:$0xff]
        %v859 = vld [vmem:[#allocation2 + $0x2c0] sm:$0xff]
        %v860 = vld [vmem:[#allocation2 + $0x2c8] sm:$0xff]
        %v861 = vld [vmem:[#allocation2 + $0x2d0] sm:$0xff]
        %v862 = vld [vmem:[#allocation2 + $0x2d8] sm:$0xff]
        %v863 = vld [vmem:[#allocation2 + $0x2e0] sm:$0xff]
        %v864 = vld [vmem:[#allocation2 + $0x2e8] sm:$0xff]
        %v865 = vld [vmem:[#allocation2 + $0x2f0] sm:$0xff]
        %v866 = vld [vmem:[#allocation2 + $0x2f8] sm:$0xff]
        %v867 = vld [vmem:[#allocation2 + $0x300] sm:$0xff]
        %v868 = vld [vmem:[#allocation2 + $0x308] sm:$0xff]
        %v869 = vld [vmem:[#allocation2 + $0x310] sm:$0xff]
        %v870 = vld [vmem:[#allocation2 + $0x318] sm:$0xff]
        %v871 = vld [vmem:[#allocation2 + $0x320] sm:$0xff]
        %v872 = vld [vmem:[#allocation2 + $0x328] sm:$0xff]
        %v873 = vld [vmem:[#allocation2 + $0x330] sm:$0xff]
        %v874 = vld [vmem:[#allocation2 + $0x338] sm:$0xff]
        %v875 = vld [vmem:[#allocation2 + $0x340] sm:$0xff]
        %v876 = vld [vmem:[#allocation2 + $0x348] sm:$0xff]
        %v877 = vld [vmem:[#allocation2 + $0x350] sm:$0xff]
        %v878 = vld [vmem:[#allocation2 + $0x358] sm:$0xff]
        %v879 = vld [vmem:[#allocation2 + $0x360] sm:$0xff]
        %v880 = vld [vmem:[#allocation2 + $0x368] sm:$0xff]
        %v881 = vld [vmem:[#allocation2 + $0x370] sm:$0xff]
        %v882 = vld [vmem:[#allocation2 + $0x378] sm:$0xff]
        %v883 = vld [vmem:[#allocation2 + $0x380] sm:$0xff]
        %v884 = vld [vmem:[#allocation2 + $0x388] sm:$0xff]
        %v885 = vld [vmem:[#allocation2 + $0x390] sm:$0xff]
        %v886 = vld [vmem:[#allocation2 + $0x398] sm:$0xff]
        %v887 = vld [vmem:[#allocation2 + $0x3a0] sm:$0xff]
        %v888 = vld [vmem:[#allocation2 + $0x3a8] sm:$0xff]
        %v889 = vld [vmem:[#allocation2 + $0x3b0] sm:$0xff]
        %v890 = vld [vmem:[#allocation2 + $0x3b8] sm:$0xff]
        %v891 = vld [vmem:[#allocation2 + $0x3c0] sm:$0xff]
        %v892 = vld [vmem:[#allocation2 + $0x3c8] sm:$0xff]
        %v893 = vld [vmem:[#allocation2 + $0x3d0] sm:$0xff]
        %v894 = vld [vmem:[#allocation2 + $0x3d8] sm:$0xff]
        %v895 = vld [vmem:[#allocation2 + $0x3e0] sm:$0xff]
        %v896 = vld [vmem:[#allocation2 + $0x3e8] sm:$0xff]
        %v897 = vld [vmem:[#allocation2 + $0x3f0] sm:$0xff]
        %v898 = vld [vmem:[#allocation2 + $0x3f8] sm:$0xff]
        %v1027 = vunpack.c.l.b16 %v771
        %v1028 = vunpack.c.h.b16 %v771
        %v1029 = vunpack.c.l.b16 %v772
        %v1030 = vunpack.c.h.b16 %v772
        %v1031 = vunpack.c.l.b16 %v773
        %v1032 = vunpack.c.h.b16 %v773
        %v1033 = vunpack.c.l.b16 %v774
        %v1034 = vunpack.c.h.b16 %v774
        %v1035 = vunpack.c.l.b16 %v775
        %v1036 = vunpack.c.h.b16 %v775
        %v1037 = vunpack.c.l.b16 %v776
        %v1038 = vunpack.c.h.b16 %v776
        %v1039 = vunpack.c.l.b16 %v777
        %v1040 = vunpack.c.h.b16 %v777
        %v1041 = vunpack.c.l.b16 %v778
        %v1042 = vunpack.c.h.b16 %v778
        %v1043 = vunpack.c.l.b16 %v779
        %v1044 = vunpack.c.h.b16 %v779
        %v1045 = vunpack.c.l.b16 %v780
        %v1046 = vunpack.c.h.b16 %v780
        %v1047 = vunpack.c.l.b16 %v781
        %v1048 = vunpack.c.h.b16 %v781
        %v1049 = vunpack.c.l.b16 %v782
        %v1050 = vunpack.c.h.b16 %v782
        %v1051 = vunpack.c.l.b16 %v783
        %v1052 = vunpack.c.h.b16 %v783
        %v1053 = vunpack.c.l.b16 %v784
        %v1054 = vunpack.c.h.b16 %v784
        %v1055 = vunpack.c.l.b16 %v785
        %v1056 = vunpack.c.h.b16 %v785
        %v1057 = vunpack.c.l.b16 %v786
        %v1058 = vunpack.c.h.b16 %v786
        %v1059 = vunpack.c.l.b16 %v787
        %v1060 = vunpack.c.h.b16 %v787
        %v1061 = vunpack.c.l.b16 %v788
        %v1062 = vunpack.c.h.b16 %v788
        %v1063 = vunpack.c.l.b16 %v789
        %v1064 = vunpack.c.h.b16 %v789
        %v1065 = vunpack.c.l.b16 %v790
        %v1066 = vunpack.c.h.b16 %v790
        %v1067 = vunpack.c.l.b16 %v791
        %v1068 = vunpack.c.h.b16 %v791
        %v1069 = vunpack.c.l.b16 %v792
        %v1070 = vunpack.c.h.b16 %v792
        %v1071 = vunpack.c.l.b16 %v793
        %v1072 = vunpack.c.h.b16 %v793
        %v1073 = vunpack.c.l.b16 %v794
        %v1074 = vunpack.c.h.b16 %v794
        %v1075 = vunpack.c.l.b16 %v795
        %v1076 = vunpack.c.h.b16 %v795
        %v1077 = vunpack.c.l.b16 %v796
        %v1078 = vunpack.c.h.b16 %v796
        %v1079 = vunpack.c.l.b16 %v797
        %v1080 = vunpack.c.h.b16 %v797
        %v1081 = vunpack.c.l.b16 %v798
        %v1082 = vunpack.c.h.b16 %v798
        %v1083 = vunpack.c.l.b16 %v799
        %v1084 = vunpack.c.h.b16 %v799
        %v1085 = vunpack.c.l.b16 %v800
        %v1086 = vunpack.c.h.b16 %v800
        %v1087 = vunpack.c.l.b16 %v801
        %v1088 = vunpack.c.h.b16 %v801
        %v1089 = vunpack.c.l.b16 %v802
        %v1090 = vunpack.c.h.b16 %v802
        %v1091 = vunpack.c.l.b16 %v803
        %v1092 = vunpack.c.h.b16 %v803
        %v1093 = vunpack.c.l.b16 %v804
        %v1094 = vunpack.c.h.b16 %v804
        %v1095 = vunpack.c.l.b16 %v805
        %v1096 = vunpack.c.h.b16 %v805
        %v1097 = vunpack.c.l.b16 %v806
        %v1098 = vunpack.c.h.b16 %v806
        %v1099 = vunpack.c.l.b16 %v807
        %v1100 = vunpack.c.h.b16 %v807
        %v1101 = vunpack.c.l.b16 %v808
        %v1102 = vunpack.c.h.b16 %v808
        %v1103 = vunpack.c.l.b16 %v809
        %v1104 = vunpack.c.h.b16 %v809
        %v1105 = vunpack.c.l.b16 %v810
        %v1106 = vunpack.c.h.b16 %v810
        %v1107 = vunpack.c.l.b16 %v811
        %v1108 = vunpack.c.h.b16 %v811
        %v1109 = vunpack.c.l.b16 %v812
        %v1110 = vunpack.c.h.b16 %v812
        %v1111 = vunpack.c.l.b16 %v813
        %v1112 = vunpack.c.h.b16 %v813
        %v1113 = vunpack.c.l.b16 %v814
        %v1114 = vunpack.c.h.b16 %v814
        %v1115 = vunpack.c.l.b16 %v815
        %v1116 = vunpack.c.h.b16 %v815
        %v1117 = vunpack.c.l.b16 %v816
        %v1118 = vunpack.c.h.b16 %v816
        %v1119 = vunpack.c.l.b16 %v817
        %v1120 = vunpack.c.h.b16 %v817
        %v1121 = vunpack.c.l.b16 %v818
        %v1122 = vunpack.c.h.b16 %v818
        %v1123 = vunpack.c.l.b16 %v819
        %v1124 = vunpack.c.h.b16 %v819
        %v1125 = vunpack.c.l.b16 %v820
        %v1126 = vunpack.c.h.b16 %v820
        %v1127 = vunpack.c.l.b16 %v821
        %v1128 = vunpack.c.h.b16 %v821
        %v1129 = vunpack.c.l.b16 %v822
        %v1130 = vunpack.c.h.b16 %v822
        %v1131 = vunpack.c.l.b16 %v823
        %v1132 = vunpack.c.h.b16 %v823
        %v1133 = vunpack.c.l.b16 %v824
        %v1134 = vunpack.c.h.b16 %v824
        %v1135 = vunpack.c.l.b16 %v825
        %v1136 = vunpack.c.h.b16 %v825
        %v1137 = vunpack.c.l.b16 %v826
        %v1138 = vunpack.c.h.b16 %v826
        %v1139 = vunpack.c.l.b16 %v827
        %v1140 = vunpack.c.h.b16 %v827
        %v1141 = vunpack.c.l.b16 %v828
        %v1142 = vunpack.c.h.b16 %v828
        %v1143 = vunpack.c.l.b16 %v829
        %v1144 = vunpack.c.h.b16 %v829
        %v1145 = vunpack.c.l.b16 %v830
        %v1146 = vunpack.c.h.b16 %v830
        %v1147 = vunpack.c.l.b16 %v831
        %v1148 = vunpack.c.h.b16 %v831
        %v1149 = vunpack.c.l.b16 %v832
        %v1150 = vunpack.c.h.b16 %v832
        %v1151 = vunpack.c.l.b16 %v833
        %v1152 = vunpack.c.h.b16 %v833
        %v1153 = vunpack.c.l.b16 %v834
        %v1154 = vunpack.c.h.b16 %v834
        %v1155 = vunpack.c.l.b16 %v835
        %v1156 = vunpack.c.h.b16 %v835
        %v1157 = vunpack.c.l.b16 %v836
        %v1158 = vunpack.c.h.b16 %v836
        %v1159 = vunpack.c.l.b16 %v837
        %v1160 = vunpack.c.h.b16 %v837
        %v1161 = vunpack.c.l.b16 %v838
        %v1162 = vunpack.c.h.b16 %v838
        %v1163 = vunpack.c.l.b16 %v839
        %v1164 = vunpack.c.h.b16 %v839
        %v1165 = vunpack.c.l.b16 %v840
        %v1166 = vunpack.c.h.b16 %v840
        %v1167 = vunpack.c.l.b16 %v841
        %v1168 = vunpack.c.h.b16 %v841
        %v1169 = vunpack.c.l.b16 %v842
        %v1170 = vunpack.c.h.b16 %v842
        %v1171 = vunpack.c.l.b16 %v843
        %v1172 = vunpack.c.h.b16 %v843
        %v1173 = vunpack.c.l.b16 %v844
        %v1174 = vunpack.c.h.b16 %v844
        %v1175 = vunpack.c.l.b16 %v845
        %v1176 = vunpack.c.h.b16 %v845
        %v1177 = vunpack.c.l.b16 %v846
        %v1178 = vunpack.c.h.b16 %v846
        %v1179 = vunpack.c.l.b16 %v847
        %v1180 = vunpack.c.h.b16 %v847
        %v1181 = vunpack.c.l.b16 %v848
        %v1182 = vunpack.c.h.b16 %v848
        %v1183 = vunpack.c.l.b16 %v849
        %v1184 = vunpack.c.h.b16 %v849
        %v1185 = vunpack.c.l.b16 %v850
        %v1186 = vunpack.c.h.b16 %v850
        %v1187 = vunpack.c.l.b16 %v851
        %v1188 = vunpack.c.h.b16 %v851
        %v1189 = vunpack.c.l.b16 %v852
        %v1190 = vunpack.c.h.b16 %v852
        %v1191 = vunpack.c.l.b16 %v853
        %v1192 = vunpack.c.h.b16 %v853
        %v1193 = vunpack.c.l.b16 %v854
        %v1194 = vunpack.c.h.b16 %v854
        %v1195 = vunpack.c.l.b16 %v855
        %v1196 = vunpack.c.h.b16 %v855
        %v1197 = vunpack.c.l.b16 %v856
        %v1198 = vunpack.c.h.b16 %v856
        %v1199 = vunpack.c.l.b16 %v857
        %v1200 = vunpack.c.h.b16 %v857
        %v1201 = vunpack.c.l.b16 %v858
        %v1202 = vunpack.c.h.b16 %v858
        %v1203 = vunpack.c.l.b16 %v859
        %v1204 = vunpack.c.h.b16 %v859
        %v1205 = vunpack.c.l.b16 %v860
        %v1206 = vunpack.c.h.b16 %v860
        %v1207 = vunpack.c.l.b16 %v861
        %v1208 = vunpack.c.h.b16 %v861
        %v1209 = vunpack.c.l.b16 %v862
        %v1210 = vunpack.c.h.b16 %v862
        %v1211 = vunpack.c.l.b16 %v863
        %v1212 = vunpack.c.h.b16 %v863
        %v1213 = vunpack.c.l.b16 %v864
        %v1214 = vunpack.c.h.b16 %v864
        %v1215 = vunpack.c.l.b16 %v865
        %v1216 = vunpack.c.h.b16 %v865
        %v1217 = vunpack.c.l.b16 %v866
        %v1218 = vunpack.c.h.b16 %v866
        %v1219 = vunpack.c.l.b16 %v867
        %v1220 = vunpack.c.h.b16 %v867
        %v1221 = vunpack.c.l.b16 %v868
        %v1222 = vunpack.c.h.b16 %v868
        %v1223 = vunpack.c.l.b16 %v869
        %v1224 = vunpack.c.h.b16 %v869
        %v1225 = vunpack.c.l.b16 %v870
        %v1226 = vunpack.c.h.b16 %v870
        %v1227 = vunpack.c.l.b16 %v871
        %v1228 = vunpack.c.h.b16 %v871
        %v1229 = vunpack.c.l.b16 %v872
        %v1230 = vunpack.c.h.b16 %v872
        %v1231 = vunpack.c.l.b16 %v873
        %v1232 = vunpack.c.h.b16 %v873
        %v1233 = vunpack.c.l.b16 %v874
        %v1234 = vunpack.c.h.b16 %v874
        %v1235 = vunpack.c.l.b16 %v875
        %v1236 = vunpack.c.h.b16 %v875
        %v1237 = vunpack.c.l.b16 %v876
        %v1238 = vunpack.c.h.b16 %v876
        %v1239 = vunpack.c.l.b16 %v877
        %v1240 = vunpack.c.h.b16 %v877
        %v1241 = vunpack.c.l.b16 %v878
        %v1242 = vunpack.c.h.b16 %v878
        %v1243 = vunpack.c.l.b16 %v879
        %v1244 = vunpack.c.h.b16 %v879
        %v1245 = vunpack.c.l.b16 %v880
        %v1246 = vunpack.c.h.b16 %v880
        %v1247 = vunpack.c.l.b16 %v881
        %v1248 = vunpack.c.h.b16 %v881
        %v1249 = vunpack.c.l.b16 %v882
        %v1250 = vunpack.c.h.b16 %v882
        %v1251 = vunpack.c.l.b16 %v883
        %v1252 = vunpack.c.h.b16 %v883
        %v1253 = vunpack.c.l.b16 %v884
        %v1254 = vunpack.c.h.b16 %v884
        %v1255 = vunpack.c.l.b16 %v885
        %v1256 = vunpack.c.h.b16 %v885
        %v1257 = vunpack.c.l.b16 %v886
        %v1258 = vunpack.c.h.b16 %v886
        %v1259 = vunpack.c.l.b16 %v887
        %v1260 = vunpack.c.h.b16 %v887
        %v1261 = vunpack.c.l.b16 %v888
        %v1262 = vunpack.c.h.b16 %v888
        %v1263 = vunpack.c.l.b16 %v889
        %v1264 = vunpack.c.h.b16 %v889
        %v1265 = vunpack.c.l.b16 %v890
        %v1266 = vunpack.c.h.b16 %v890
        %v1267 = vunpack.c.l.b16 %v891
        %v1268 = vunpack.c.h.b16 %v891
        %v1269 = vunpack.c.l.b16 %v892
        %v1270 = vunpack.c.h.b16 %v892
        %v1271 = vunpack.c.l.b16 %v893
        %v1272 = vunpack.c.h.b16 %v893
        %v1273 = vunpack.c.l.b16 %v894
        %v1274 = vunpack.c.h.b16 %v894
        %v1275 = vunpack.c.l.b16 %v895
        %v1276 = vunpack.c.h.b16 %v895
        %v1277 = vunpack.c.l.b16 %v896
        %v1278 = vunpack.c.h.b16 %v896
        %v1279 = vunpack.c.l.b16 %v897
        %v1280 = vunpack.c.h.b16 %v897
        %v1281 = vunpack.c.l.b16 %v898
        %v1282 = vunpack.c.h.b16 %v898
        %v1283 = vpack.c.b16 %v1035, %v1027
        %v1284 = vpack.c.b16 %v1036, %v1028
        %v1285 = vpack.c.b16 %v1037, %v1029
        %v1286 = vpack.c.b16 %v1038, %v1030
        %v1287 = vpack.c.b16 %v1039, %v1031
        %v1288 = vpack.c.b16 %v1040, %v1032
        %v1289 = vpack.c.b16 %v1041, %v1033
        %v1290 = vpack.c.b16 %v1042, %v1034
        %v1291 = vpack.c.b16 %v1051, %v1043
        %v1292 = vpack.c.b16 %v1052, %v1044
        %v1293 = vpack.c.b16 %v1053, %v1045
        %v1294 = vpack.c.b16 %v1054, %v1046
        %v1295 = vpack.c.b16 %v1055, %v1047
        %v1296 = vpack.c.b16 %v1056, %v1048
        %v1297 = vpack.c.b16 %v1057, %v1049
        %v1298 = vpack.c.b16 %v1058, %v1050
        %v1299 = vpack.c.b16 %v1067, %v1059
        %v1300 = vpack.c.b16 %v1068, %v1060
        %v1301 = vpack.c.b16 %v1069, %v1061
        %v1302 = vpack.c.b16 %v1070, %v1062
        %v1303 = vpack.c.b16 %v1071, %v1063
        %v1304 = vpack.c.b16 %v1072, %v1064
        %v1305 = vpack.c.b16 %v1073, %v1065
        %v1306 = vpack.c.b16 %v1074, %v1066
        %v1307 = vpack.c.b16 %v1083, %v1075
        %v1308 = vpack.c.b16 %v1084, %v1076
        %v1309 = vpack.c.b16 %v1085, %v1077
        %v1310 = vpack.c.b16 %v1086, %v1078
        %v1311 = vpack.c.b16 %v1087, %v1079
        %v1312 = vpack.c.b16 %v1088, %v1080
        %v1313 = vpack.c.b16 %v1089, %v1081
        %v1314 = vpack.c.b16 %v1090, %v1082
        %v1315 = vpack.c.b16 %v1099, %v1091
        %v1316 = vpack.c.b16 %v1100, %v1092
        %v1317 = vpack.c.b16 %v1101, %v1093
        %v1318 = vpack.c.b16 %v1102, %v1094
        %v1319 = vpack.c.b16 %v1103, %v1095
        %v1320 = vpack.c.b16 %v1104, %v1096
        %v1321 = vpack.c.b16 %v1105, %v1097
        %v1322 = vpack.c.b16 %v1106, %v1098
        %v1323 = vpack.c.b16 %v1115, %v1107
        %v1324 = vpack.c.b16 %v1116, %v1108
        %v1325 = vpack.c.b16 %v1117, %v1109
        %v1326 = vpack.c.b16 %v1118, %v1110
        %v1327 = vpack.c.b16 %v1119, %v1111
        %v1328 = vpack.c.b16 %v1120, %v1112
        %v1329 = vpack.c.b16 %v1121, %v1113
        %v1330 = vpack.c.b16 %v1122, %v1114
        %v1331 = vpack.c.b16 %v1131, %v1123
        %v1332 = vpack.c.b16 %v1132, %v1124
        %v1333 = vpack.c.b16 %v1133, %v1125
        %v1334 = vpack.c.b16 %v1134, %v1126
        %v1335 = vpack.c.b16 %v1135, %v1127
        %v1336 = vpack.c.b16 %v1136, %v1128
        %v1337 = vpack.c.b16 %v1137, %v1129
        %v1338 = vpack.c.b16 %v1138, %v1130
        %v1339 = vpack.c.b16 %v1147, %v1139
        %v1340 = vpack.c.b16 %v1148, %v1140
        %v1341 = vpack.c.b16 %v1149, %v1141
        %v1342 = vpack.c.b16 %v1150, %v1142
        %v1343 = vpack.c.b16 %v1151, %v1143
        %v1344 = vpack.c.b16 %v1152, %v1144
        %v1345 = vpack.c.b16 %v1153, %v1145
        %v1346 = vpack.c.b16 %v1154, %v1146
        %v1347 = vpack.c.b16 %v1163, %v1155
        %v1348 = vpack.c.b16 %v1164, %v1156
        %v1349 = vpack.c.b16 %v1165, %v1157
        %v1350 = vpack.c.b16 %v1166, %v1158
        %v1351 = vpack.c.b16 %v1167, %v1159
        %v1352 = vpack.c.b16 %v1168, %v1160
        %v1353 = vpack.c.b16 %v1169, %v1161
        %v1354 = vpack.c.b16 %v1170, %v1162
        %v1355 = vpack.c.b16 %v1179, %v1171
        %v1356 = vpack.c.b16 %v1180, %v1172
        %v1357 = vpack.c.b16 %v1181, %v1173
        %v1358 = vpack.c.b16 %v1182, %v1174
        %v1359 = vpack.c.b16 %v1183, %v1175
        %v1360 = vpack.c.b16 %v1184, %v1176
        %v1361 = vpack.c.b16 %v1185, %v1177
        %v1362 = vpack.c.b16 %v1186, %v1178
        %v1363 = vpack.c.b16 %v1195, %v1187
        %v1364 = vpack.c.b16 %v1196, %v1188
        %v1365 = vpack.c.b16 %v1197, %v1189
        %v1366 = vpack.c.b16 %v1198, %v1190
        %v1367 = vpack.c.b16 %v1199, %v1191
        %v1368 = vpack.c.b16 %v1200, %v1192
        %v1369 = vpack.c.b16 %v1201, %v1193
        %v1370 = vpack.c.b16 %v1202, %v1194
        %v1371 = vpack.c.b16 %v1211, %v1203
        %v1372 = vpack.c.b16 %v1212, %v1204
        %v1373 = vpack.c.b16 %v1213, %v1205
        %v1374 = vpack.c.b16 %v1214, %v1206
        %v1375 = vpack.c.b16 %v1215, %v1207
        %v1376 = vpack.c.b16 %v1216, %v1208
        %v1377 = vpack.c.b16 %v1217, %v1209
        %v1378 = vpack.c.b16 %v1218, %v1210
        %v1379 = vpack.c.b16 %v1227, %v1219
        %v1380 = vpack.c.b16 %v1228, %v1220
        %v1381 = vpack.c.b16 %v1229, %v1221
        %v1382 = vpack.c.b16 %v1230, %v1222
        %v1383 = vpack.c.b16 %v1231, %v1223
        %v1384 = vpack.c.b16 %v1232, %v1224
        %v1385 = vpack.c.b16 %v1233, %v1225
        %v1386 = vpack.c.b16 %v1234, %v1226
        %v1387 = vpack.c.b16 %v1243, %v1235
        %v1388 = vpack.c.b16 %v1244, %v1236
        %v1389 = vpack.c.b16 %v1245, %v1237
        %v1390 = vpack.c.b16 %v1246, %v1238
        %v1391 = vpack.c.b16 %v1247, %v1239
        %v1392 = vpack.c.b16 %v1248, %v1240
        %v1393 = vpack.c.b16 %v1249, %v1241
        %v1394 = vpack.c.b16 %v1250, %v1242
        %v1395 = vpack.c.b16 %v1259, %v1251
        %v1396 = vpack.c.b16 %v1260, %v1252
        %v1397 = vpack.c.b16 %v1261, %v1253
        %v1398 = vpack.c.b16 %v1262, %v1254
        %v1399 = vpack.c.b16 %v1263, %v1255
        %v1400 = vpack.c.b16 %v1264, %v1256
        %v1401 = vpack.c.b16 %v1265, %v1257
        %v1402 = vpack.c.b16 %v1266, %v1258
        %v1403 = vpack.c.b16 %v1275, %v1267
        %v1404 = vpack.c.b16 %v1276, %v1268
        %v1405 = vpack.c.b16 %v1277, %v1269
        %v1406 = vpack.c.b16 %v1278, %v1270
        %v1407 = vpack.c.b16 %v1279, %v1271
        %v1408 = vpack.c.b16 %v1280, %v1272
        %v1409 = vpack.c.b16 %v1281, %v1273
        %v1410 = vpack.c.b16 %v1282, %v1274
        %1539 = vmatprep.subr.bf16.mxu0 %v1284
        %1540 = vmatpush1.bf16.msra.mxu0 %v1283
        %1541 = vmatprep.subr.bf16.mxu0 %v1292
        %1542 = vmatpush1.bf16.msra.mxu0 %v1291
        %1543 = vmatprep.subr.bf16.mxu0 %v1300
        %1544 = vmatpush1.bf16.msra.mxu0 %v1299
        %1545 = vmatprep.subr.bf16.mxu0 %v1308
        %1546 = vmatpush1.bf16.msra.mxu0 %v1307
        %1547 = vmatprep.subr.bf16.mxu0 %v1316
        %1548 = vmatpush1.bf16.msra.mxu0 %v1315
        %1549 = vmatprep.subr.bf16.mxu0 %v1324
        %1550 = vmatpush1.bf16.msra.mxu0 %v1323
        %1551 = vmatprep.subr.bf16.mxu0 %v1332
        %1552 = vmatpush1.bf16.msra.mxu0 %v1331
        %1553 = vmatprep.subr.bf16.mxu0 %v1340
        %1554 = vmatpush1.bf16.msra.mxu0 %v1339
        %1555 = vmatprep.subr.bf16.mxu0 %v1348
        %1556 = vmatpush1.bf16.msra.mxu0 %v1347
        %1557 = vmatprep.subr.bf16.mxu0 %v1356
        %1558 = vmatpush1.bf16.msra.mxu0 %v1355
        %1559 = vmatprep.subr.bf16.mxu0 %v1364
        %1560 = vmatpush1.bf16.msra.mxu0 %v1363
        %1561 = vmatprep.subr.bf16.mxu0 %v1372
        %1562 = vmatpush1.bf16.msra.mxu0 %v1371
        %1563 = vmatprep.subr.bf16.mxu0 %v1380
        %1564 = vmatpush1.bf16.msra.mxu0 %v1379
        %1565 = vmatprep.subr.bf16.mxu0 %v1388
        %1566 = vmatpush1.bf16.msra.mxu0 %v1387
        %1567 = vmatprep.subr.bf16.mxu0 %v1396
        %1568 = vmatpush1.bf16.msra.mxu0 %v1395
        %1569 = vmatprep.subr.bf16.mxu0 %v1404
        %1570 = vmatpush1.bf16.msra.mxu0 %v1403
        %1571 = vmatprep.mubr.bf16.mxu0 %v768
        %1572 = vmatmul.mubr.bf16.gmra.mrb[0].mxu0 %v767
        %v1573 = vpop.f32.mrb[0].mxu0
        %v1574 = vadd.f32 0.0, %v1573
        %v1575 = vpop.f32.mrb[0].mxu0
        %v1576 = vadd.f32 0.0, %v1575
        %v1577 = vpop.f32.mrb[0].mxu0
        %v1578 = vadd.f32 0.0, %v1577
        %v1579 = vpop.f32.mrb[0].mxu0
        %v1580 = vadd.f32 0.0, %v1579
        %1581 = vmatprep.mubr.bf16.mxu0 %v770
        %1582 = vmatmul.mubr.bf16.gmra.mrb[0].mxu0 %v769
        %v1583 = vpop.f32.mrb[0].mxu0
        %v1584 = vadd.f32 0.0, %v1583
        %v1585 = vpop.f32.mrb[0].mxu0
        %v1586 = vadd.f32 0.0, %v1585
        %v1587 = vpop.f32.mrb[0].mxu0
        %v1588 = vadd.f32 0.0, %v1587
        %v1589 = vpop.f32.mrb[0].mxu0
        %v1590 = vadd.f32 0.0, %v1589
        %1591 = vdwg.mxu0
        %1592 = vmatprep.subr.bf16.mxu0 %v1286
        %1593 = vmatpush1.bf16.msra.mxu0 %v1285
        %1594 = vmatprep.subr.bf16.mxu0 %v1294
        %1595 = vmatpush1.bf16.msra.mxu0 %v1293
        %1596 = vmatprep.subr.bf16.mxu0 %v1302
        %1597 = vmatpush1.bf16.msra.mxu0 %v1301
        %1598 = vmatprep.subr.bf16.mxu0 %v1310
        %1599 = vmatpush1.bf16.msra.mxu0 %v1309
        %1600 = vmatprep.subr.bf16.mxu0 %v1318
        %1601 = vmatpush1.bf16.msra.mxu0 %v1317
        %1602 = vmatprep.subr.bf16.mxu0 %v1326
        %1603 = vmatpush1.bf16.msra.mxu0 %v1325
        %1604 = vmatprep.subr.bf16.mxu0 %v1334
        %1605 = vmatpush1.bf16.msra.mxu0 %v1333
        %1606 = vmatprep.subr.bf16.mxu0 %v1342
        %1607 = vmatpush1.bf16.msra.mxu0 %v1341
        %1608 = vmatprep.subr.bf16.mxu0 %v1350
        %1609 = vmatpush1.bf16.msra.mxu0 %v1349
        %1610 = vmatprep.subr.bf16.mxu0 %v1358
        %1611 = vmatpush1.bf16.msra.mxu0 %v1357
        %1612 = vmatprep.subr.bf16.mxu0 %v1366
        %1613 = vmatpush1.bf16.msra.mxu0 %v1365
        %1614 = vmatprep.subr.bf16.mxu0 %v1374
        %1615 = vmatpush1.bf16.msra.mxu0 %v1373
        %1616 = vmatprep.subr.bf16.mxu0 %v1382
        %1617 = vmatpush1.bf16.msra.mxu0 %v1381
        %1618 = vmatprep.subr.bf16.mxu0 %v1390
        %1619 = vmatpush1.bf16.msra.mxu0 %v1389
        %1620 = vmatprep.subr.bf16.mxu0 %v1398
        %1621 = vmatpush1.bf16.msra.mxu0 %v1397
        %1622 = vmatprep.subr.bf16.mxu0 %v1406
        %1623 = vmatpush1.bf16.msra.mxu0 %v1405
        %1624 = vmatprep.mubr.bf16.mxu0 %v768
        %1625 = vmatmul.mubr.bf16.gmra.mrb[0].mxu0 %v767
        %v1626 = vpop.f32.mrb[0].mxu0
        %v1627 = vadd.f32 0.0, %v1626
        %v1628 = vpop.f32.mrb[0].mxu0
        %v1629 = vadd.f32 0.0, %v1628
        %v1630 = vpop.f32.mrb[0].mxu0
        %v1631 = vadd.f32 0.0, %v1630
        %v1632 = vpop.f32.mrb[0].mxu0
        %v1633 = vadd.f32 0.0, %v1632
        %1634 = vmatprep.mubr.bf16.mxu0 %v770
        %1635 = vmatmul.mubr.bf16.gmra.mrb[0].mxu0 %v769
        %v1636 = vpop.f32.mrb[0].mxu0
        %v1637 = vadd.f32 0.0, %v1636
        %v1638 = vpop.f32.mrb[0].mxu0
        %v1639 = vadd.f32 0.0, %v1638
        %v1640 = vpop.f32.mrb[0].mxu0
        %v1641 = vadd.f32 0.0, %v1640
        %v1642 = vpop.f32.mrb[0].mxu0
        %v1643 = vadd.f32 0.0, %v1642
        %1644 = vdwg.mxu0
        %1645 = vmatprep.subr.bf16.mxu0 %v1288
        %1646 = vmatpush1.bf16.msra.mxu0 %v1287
        %1647 = vmatprep.subr.bf16.mxu0 %v1296
        %1648 = vmatpush1.bf16.msra.mxu0 %v1295
        %1649 = vmatprep.subr.bf16.mxu0 %v1304
        %1650 = vmatpush1.bf16.msra.mxu0 %v1303
        %1651 = vmatprep.subr.bf16.mxu0 %v1312
        %1652 = vmatpush1.bf16.msra.mxu0 %v1311
        %1653 = vmatprep.subr.bf16.mxu0 %v1320
        %1654 = vmatpush1.bf16.msra.mxu0 %v1319
        %1655 = vmatprep.subr.bf16.mxu0 %v1328
        %1656 = vmatpush1.bf16.msra.mxu0 %v1327
        %1657 = vmatprep.subr.bf16.mxu0 %v1336
        %1658 = vmatpush1.bf16.msra.mxu0 %v1335
        %1659 = vmatprep.subr.bf16.mxu0 %v1344
        %1660 = vmatpush1.bf16.msra.mxu0 %v1343
        %1661 = vmatprep.subr.bf16.mxu0 %v1352
        %1662 = vmatpush1.bf16.msra.mxu0 %v1351
        %1663 = vmatprep.subr.bf16.mxu0 %v1360
        %1664 = vmatpush1.bf16.msra.mxu0 %v1359
        %1665 = vmatprep.subr.bf16.mxu0 %v1368
        %1666 = vmatpush1.bf16.msra.mxu0 %v1367
        %1667 = vmatprep.subr.bf16.mxu0 %v1376
        %1668 = vmatpush1.bf16.msra.mxu0 %v1375
        %1669 = vmatprep.subr.bf16.mxu0 %v1384
        %1670 = vmatpush1.bf16.msra.mxu0 %v1383
        %1671 = vmatprep.subr.bf16.mxu0 %v1392
        %1672 = vmatpush1.bf16.msra.mxu0 %v1391
        %1673 = vmatprep.subr.bf16.mxu0 %v1400
        %1674 = vmatpush1.bf16.msra.mxu0 %v1399
        %1675 = vmatprep.subr.bf16.mxu0 %v1408
        %1676 = vmatpush1.bf16.msra.mxu0 %v1407
        %1677 = vmatprep.mubr.bf16.mxu0 %v768
        %1678 = vmatmul.mubr.bf16.gmra.mrb[0].mxu0 %v767
        %v1679 = vpop.f32.mrb[0].mxu0
        %v1680 = vadd.f32 0.0, %v1679
        %v1681 = vpop.f32.mrb[0].mxu0
        %v1682 = vadd.f32 0.0, %v1681
        %v1683 = vpop.f32.mrb[0].mxu0
        %v1684 = vadd.f32 0.0, %v1683
        %v1685 = vpop.f32.mrb[0].mxu0
        %v1686 = vadd.f32 0.0, %v1685
        %1687 = vmatprep.mubr.bf16.mxu0 %v770
        %1688 = vmatmul.mubr.bf16.gmra.mrb[0].mxu0 %v769
        %v1689 = vpop.f32.mrb[0].mxu0
        %v1690 = vadd.f32 0.0, %v1689
        %v1691 = vpop.f32.mrb[0].mxu0
        %v1692 = vadd.f32 0.0, %v1691
        %v1693 = vpop.f32.mrb[0].mxu0
        %v1694 = vadd.f32 0.0, %v1693
        %v1695 = vpop.f32.mrb[0].mxu0
        %v1696 = vadd.f32 0.0, %v1695
        %1697 = vdwg.mxu0
        %1698 = vmatprep.subr.bf16.mxu0 %v1290
        %1699 = vmatpush1.bf16.msra.mxu0 %v1289
        %1700 = vmatprep.subr.bf16.mxu0 %v1298
        %1701 = vmatpush1.bf16.msra.mxu0 %v1297
        %1702 = vmatprep.subr.bf16.mxu0 %v1306
        %1703 = vmatpush1.bf16.msra.mxu0 %v1305
        %1704 = vmatprep.subr.bf16.mxu0 %v1314
        %1705 = vmatpush1.bf16.msra.mxu0 %v1313
        %1706 = vmatprep.subr.bf16.mxu0 %v1322
        %1707 = vmatpush1.bf16.msra.mxu0 %v1321
        %1708 = vmatprep.subr.bf16.mxu0 %v1330
        %1709 = vmatpush1.bf16.msra.mxu0 %v1329
        %1710 = vmatprep.subr.bf16.mxu0 %v1338
        %1711 = vmatpush1.bf16.msra.mxu0 %v1337
        %1712 = vmatprep.subr.bf16.mxu0 %v1346
        %1713 = vmatpush1.bf16.msra.mxu0 %v1345
        %1714 = vmatprep.subr.bf16.mxu0 %v1354
        %1715 = vmatpush1.bf16.msra.mxu0 %v1353
        %1716 = vmatprep.subr.bf16.mxu0 %v1362
        %1717 = vmatpush1.bf16.msra.mxu0 %v1361
        %1718 = vmatprep.subr.bf16.mxu0 %v1370
        %1719 = vmatpush1.bf16.msra.mxu0 %v1369
        %1720 = vmatprep.subr.bf16.mxu0 %v1378
        %1721 = vmatpush1.bf16.msra.mxu0 %v1377
        %1722 = vmatprep.subr.bf16.mxu0 %v1386
        %1723 = vmatpush1.bf16.msra.mxu0 %v1385
        %1724 = vmatprep.subr.bf16.mxu0 %v1394
        %1725 = vmatpush1.bf16.msra.mxu0 %v1393
        %1726 = vmatprep.subr.bf16.mxu0 %v1402
        %1727 = vmatpush1.bf16.msra.mxu0 %v1401
        %1728 = vmatprep.subr.bf16.mxu0 %v1410
        %1729 = vmatpush1.bf16.msra.mxu0 %v1409
        %1730 = vmatprep.mubr.bf16.mxu0 %v768
        %1731 = vmatmul.mubr.bf16.gmra.mrb[0].mxu0 %v767
        %v1732 = vpop.f32.mrb[0].mxu0
        %v1733 = vadd.f32 0.0, %v1732
        %v1734 = vpop.f32.mrb[0].mxu0
        %v1735 = vadd.f32 0.0, %v1734
        %v1736 = vpop.f32.mrb[0].mxu0
        %v1737 = vadd.f32 0.0, %v1736
        %v1738 = vpop.f32.mrb[0].mxu0
        %v1739 = vadd.f32 0.0, %v1738
        %1740 = vmatprep.mubr.bf16.mxu0 %v770
        %1741 = vmatmul.mubr.bf16.gmra.mrb[0].mxu0 %v769
        %v1742 = vpop.f32.mrb[0].mxu0
        %v1743 = vadd.f32 0.0, %v1742
        %v1744 = vpop.f32.mrb[0].mxu0
        %v1745 = vadd.f32 0.0, %v1744
        %v1746 = vpop.f32.mrb[0].mxu0
        %v1747 = vadd.f32 0.0, %v1746
        %v1748 = vpop.f32.mrb[0].mxu0
        %v1749 = vadd.f32 0.0, %v1748
        %1750 = vdwg.mxu0
        %1751 = vst [vmem:[%s286] sm:$0xff] %v1574
        %1752 = vst [vmem:[%s286 + $0x8] sm:$0xff] %v1576
        %1753 = vst [vmem:[%s286 + $0x10] sm:$0xff] %v1627
        %1754 = vst [vmem:[%s286 + $0x18] sm:$0xff] %v1629
        %1755 = vst [vmem:[%s286 + $0x20] sm:$0xff] %v1680
        %1756 = vst [vmem:[%s286 + $0x28] sm:$0xff] %v1682
        %1757 = vst [vmem:[%s286 + $0x30] sm:$0xff] %v1733
        %1758 = vst [vmem:[%s286 + $0x38] sm:$0xff] %v1735
        %1759 = vst [vmem:[%s286 + $0x40] sm:$0xff] %v1578
        %1760 = vst [vmem:[%s286 + $0x48] sm:$0xff] %v1580
        %1761 = vst [vmem:[%s286 + $0x50] sm:$0xff] %v1631
        %1762 = vst [vmem:[%s286 + $0x58] sm:$0xff] %v1633
        %1763 = vst [vmem:[%s286 + $0x60] sm:$0xff] %v1684
        %1764 = vst [vmem:[%s286 + $0x68] sm:$0xff] %v1686
        %1765 = vst [vmem:[%s286 + $0x70] sm:$0xff] %v1737
        %1766 = vst [vmem:[%s286 + $0x78] sm:$0xff] %v1739
        %1767 = vst [vmem:[%s286 + $0x80] sm:$0xff] %v1584
        %1768 = vst [vmem:[%s286 + $0x88] sm:$0xff] %v1586
        %1769 = vst [vmem:[%s286 + $0x90] sm:$0xff] %v1637
        %1770 = vst [vmem:[%s286 + $0x98] sm:$0xff] %v1639
        %1771 = vst [vmem:[%s286 + $0xa0] sm:$0xff] %v1690
        %1772 = vst [vmem:[%s286 + $0xa8] sm:$0xff] %v1692
        %1773 = vst [vmem:[%s286 + $0xb0] sm:$0xff] %v1743
        %1774 = vst [vmem:[%s286 + $0xb8] sm:$0xff] %v1745
        %1775 = vst [vmem:[%s286 + $0xc0] sm:$0xff] %v1588
        %1776 = vst [vmem:[%s286 + $0xc8] sm:$0xff] %v1590
        %1777 = vst [vmem:[%s286 + $0xd0] sm:$0xff] %v1641
        %1778 = vst [vmem:[%s286 + $0xd8] sm:$0xff] %v1643
        %1779 = vst [vmem:[%s286 + $0xe0] sm:$0xff] %v1694
        %1780 = vst [vmem:[%s286 + $0xe8] sm:$0xff] %v1696
        %1781 = vst [vmem:[%s286 + $0xf0] sm:$0xff] %v1747
        %1782 = vst [vmem:[%s286 + $0xf8] sm:$0xff] %v1749
        %s1783 = sand.u32 %s182, 1
        %s1784 = scalar_lea.sflag [#allocation4], %s1783
        %s1785 = sand.u32 %s182, 1
        %s1786 = smul.addr %s1785, 256
        %s1787 = scalar_lea.vmem [#allocation5], %s1786
        // Predicated region
        $region53: #{tpu_custom_call.1} parent=47 // pred_check
          %p1788 = pneg %p192
        $region54: #{tpu_custom_call.1} parent=47 // pred_check_branch
          %1790 = sbr.rel (%p1788) target = $region56
        $region55: #{tpu_custom_call.1} parent=47 // pred_region
          %s1792 = ssub.s32 4096, 4096
          %1793 = vsyncadd %s1784, %s1792
          %s1794 = smul.addr %s22, 32
          %s1795 = smul.addr %s1794, 128
          %s1796 = scalar_lea.hbm %s7, %s1795
          %s1797 = sshll.u32 %s1787, 4
          %s1798 = int_to_ptr.vmem [resolvable:$true] %s1797
          %1803 = dma.vmem_to_hbm [thread:$0]  %s1798, 4096, %s1796, %s1784, 1024, 1024, 64
        $region56: #{tpu_custom_call.1} parent=47 // pred_fallthru
          _
      $region48: #{tpu_custom_call.1} parent=5 // pred_fallthru
        _
      %p1804 = scmp.le.s32.totalorder 2, %s17
      // Predicated region
      $region57: #{tpu_custom_call.1} parent=5 // pred_check
        %p1805 = pneg %p1804
      $region58: #{tpu_custom_call.1} parent=5 // pred_check_branch
        %1807 = sbr.rel (%p1805) target = $region60
      $region59: #{tpu_custom_call.1} parent=5 // pred_region
        %s1808 = ssub.s32 %s17, 2
        // Predicated region
        $region61: #{tpu_custom_call.1} parent=59 // pred_check
          %p1809 = pneg %p198
        $region62: #{tpu_custom_call.1} parent=59 // pred_check_branch
          %1811 = sbr.rel (%p1809) target = $region64
        $region63: #{tpu_custom_call.1} parent=59 // pred_region
          %s1812 = sand.u32 %s183, 1
          %s1813 = scalar_lea.sflag [#allocation4], %s1812
          %s1814 = sand.u32 %s183, 1
          %s1815 = smul.addr %s1814, 256
          %s1816 = scalar_lea.vmem [#allocation5], %s1815
          %1817 = dma.done %s1813, 4096
        $region64: #{tpu_custom_call.1} parent=59 // pred_fallthru
          _
      $region60: #{tpu_custom_call.1} parent=5 // pred_fallthru
        _
    $region6: #{tpu_custom_call.1} parent=1 // loop_footer
      %s21 = sadd.s32 1, %s17
    $region7: #{tpu_custom_call.1} parent=1 // loop_footer_branch
      %16 = sbr.rel target = $region3
    $region8: #{tpu_custom_call.1} parent=1 // loop_exit
      _
    %1818 = vsyncpa [#allocation3], 1
    %s1819 = scalar_lea.sflag [#allocation3], 1
    %1820 = vsyncpa %s1819, 1
    %1821 = vsyncpa [#allocation4], 1
    %s1822 = scalar_lea.sflag [#allocation4], 1
    %1823 = vsyncpa %s1822, 1

</llo_original>
